<compile_context>
chip_gen: v5e
topology: v5e:2x2
jax: 0.10.0
libtpu: 0.0.40
codegen_flags: <defaults>
</compile_context>

<pallas_src>
import math

import jax
import jax.numpy as jnp
from jax.experimental import pallas as pl
from jax.experimental.pallas import tpu as pltpu

# ----------------------------- configuration --------------------------------
INPUT_DIM    = 4        # image channels
N_CLASSES    = 10
N_TIMESTEPS  = 1000
IM_SIZE      = 16
KERNEL_SIZE  = 4
DIM          = 32
N_LAYERS     = 2
ORDER        = 2
ORDER_EXPAND = 4
FFW_EXPAND   = 4

N_PATCH = IM_SIZE // KERNEL_SIZE                    # 4
N_TOK   = N_PATCH * N_PATCH                         # 16 tokens
CKK     = INPUT_DIM * KERNEL_SIZE * KERNEL_SIZE     # 64  (patch pixels)
OED     = ORDER_EXPAND * DIM                        # 128
OOED    = ORDER * OED                               # 256
FD      = FFW_EXPAND * DIM                          # 128 (== OED, so Wo/W2 stack)
KKC     = KERNEL_SIZE * KERNEL_SIZE * INPUT_DIM     # 64  (real out-proj width)
QKVW    = 2 * OOED + OED                            # 640 fused q|k|v width
NC      = 6 * N_LAYERS + 3                          # packed cond slots (incl. pos)
OUT_PAD = 128                                       # lane-dense output width


# ----------------------------- shared math -----------------------------------
def _ln(x, eps=1e-6):
    """LayerNorm over last dim, no affine (matches nn.LayerNorm(eps=1e-6))."""
    mu = jnp.mean(x, axis=-1, keepdims=True)
    var = jnp.mean((x - mu) ** 2, axis=-1, keepdims=True)
    return (x - mu) * jax.lax.rsqrt(var + eps)


def _modulate(x, scale, bias):
    return x * (1.0 + scale) + bias


def sincos_embedding_2d(h, w, d):
    f_max = d // 4
    f = (jnp.arange(f_max, dtype=jnp.float32) * 2 + 1).reshape(1, 1, f_max)
    xs = jnp.linspace(0.0, 1.0, w).reshape(1, w, 1)
    xe = jnp.concatenate([jnp.sin(xs * f * math.pi), jnp.cos(xs * f * math.pi)], axis=-1)
    xe = jnp.broadcast_to(xe.reshape(1, 1, w, 2 * f_max), (1, h, w, 2 * f_max))
    ys = jnp.linspace(0.0, 1.0, h).reshape(1, h, 1)
    ye = jnp.concatenate([jnp.sin(ys * f * math.pi), jnp.cos(ys * f * math.pi)], axis=-1)
    ye = jnp.broadcast_to(ye.reshape(1, h, 1, 2 * f_max), (1, h, w, 2 * f_max))
    return jnp.concatenate([xe, ye], axis=-1)  # (1, h, w, d)


# ----------------------------- fused Pallas kernel ----------------------------
def _make_fused_forward(B):
    """Build the single fused pallas_call for batch size B."""
    ROWS_ALL = B * N_TOK
    # Only split across the two v7x TensorCores when each core gets >= 128
    # rows of matmul M; otherwise a single grid step (batch folded into M).
    GRID = 2 if (B % 2 == 0 and ROWS_ALL // 2 >= 128) else 1
    BPG = B // GRID                 # batch elements per grid step
    ROWS = BPG * N_TOK              # token rows handled per grid step

    def kernel(p_ref, cond_ref, w_in_ref, wa_ref, wb_ref, wout_ref, o_ref):
        def ln_mod(x, scale1p, bias):
            # LayerNorm with the (1+scale) factor folded into the rsqrt product.
            mu = jnp.mean(x, axis=-1, keepdims=True)
            xc = x - mu
            var = jnp.mean(xc * xc, axis=-1, keepdims=True)
            return xc * (jax.lax.rsqrt(var + 1e-6) * scale1p) + bias

        def gelu_tanh(x):
            # tanh-approx GELU (EUP tanh; |err vs erf-GELU| < ~4e-4).
            c0 = 0.7978845608028654
            return 0.5 * x * (1.0 + jnp.tanh(c0 * (x + 0.044715 * x * x * x)))

        # ---- patch embedding; cond_ref[0] = pos_emb + conv bias, per row ----
        x = jnp.dot(p_ref[...], w_in_ref[...],
                    preferred_element_type=jnp.float32) + cond_ref[0]   # (ROWS, DIM)

        # ---- DiH blocks: static unroll, weights resident in VMEM ----
        for l in range(N_LAYERS):
            base = 1 + 6 * l
            # HoM branch (fused QKV matmul; 128-lane-aligned static slices)
            xm = ln_mod(x, cond_ref[base], cond_ref[base + 1])
            qkv = (jnp.dot(xm, wa_ref[l, :DIM, :QKVW],
                           preferred_element_type=jnp.float32)
                   + wa_ref[l, DIM:, :QKVW])                            # (ROWS, 640)
            q3 = qkv[:, 0:OOED].reshape(BPG, N_TOK, OOED)
            k3 = qkv[:, OOED:2 * OOED].reshape(BPG, N_TOK, OOED)
            y3 = qkv[:, 2 * OOED:QKVW].reshape(BPG, N_TOK, OED)
            # softmax over the token axis, per batch element
            k3 = jnp.exp(k3 - jnp.max(k3, axis=1, keepdims=True))
            k3 = k3 / jnp.sum(k3, axis=1, keepdims=True)
            for o in range(ORDER):                                      # static order
                ctx = jnp.sum(k3[:, :, o * OED:(o + 1) * OED] * y3,
                              axis=1, keepdims=True)                    # global context
                y3 = q3[:, :, o * OED:(o + 1) * OED] * ctx
            y = y3.reshape(ROWS, OED)
            hom = (jnp.dot(y, wb_ref[2 * l, :OED, :],
                           preferred_element_type=jnp.float32)
                   + wb_ref[2 * l, OED:, :])
            x = x + hom * cond_ref[base + 4]                            # gate has +1 folded

            # FFW branch
            xm = ln_mod(x, cond_ref[base + 2], cond_ref[base + 3])
            h = (jnp.dot(xm, wa_ref[l, :DIM, QKVW:],
                         preferred_element_type=jnp.float32)
                 + wa_ref[l, DIM:, QKVW:])
            h = gelu_tanh(h)
            f = (jnp.dot(h, wb_ref[2 * l + 1, :OED, :],
                         preferred_element_type=jnp.float32)
                 + wb_ref[2 * l + 1, OED:, :])
            x = x + f * cond_ref[base + 5]

        # ---- output head (lane-padded to 128 for a dense store) ----
        xm = ln_mod(x, cond_ref[1 + 6 * N_LAYERS], cond_ref[2 + 6 * N_LAYERS])
        o_ref[...] = (jnp.dot(xm, wout_ref[:DIM, :],
                              preferred_element_type=jnp.float32)
                      + wout_ref[DIM:, :])

    in_specs = [
        pl.BlockSpec((ROWS, CKK), lambda g: (g, 0)),                       # patches
        pl.BlockSpec((NC, ROWS, DIM), lambda g: (0, g, 0)),                # packed cond
        pl.BlockSpec((CKK, DIM), lambda g: (0, 0)),                        # in conv
        pl.BlockSpec((N_LAYERS, DIM + 1, QKVW + FD), lambda g: (0, 0, 0)),  # Wqkv|W1 (+bias row)
        pl.BlockSpec((2 * N_LAYERS, OED + 1, DIM), lambda g: (0, 0, 0)),    # Wo / W2 (+bias row)
        pl.BlockSpec((DIM + 1, OUT_PAD), lambda g: (0, 0)),                 # out proj (+bias row)
    ]
    out_specs = pl.BlockSpec((ROWS, OUT_PAD), lambda g: (g, 0))
    sem = ("parallel",) if GRID > 1 else ("arbitrary",)

    return pl.pallas_call(
        kernel,
        out_shape=jax.ShapeDtypeStruct((ROWS_ALL, OUT_PAD), jnp.float32),
        grid=(GRID,),
        in_specs=in_specs,
        out_specs=out_specs,
        compiler_params=pltpu.CompilerParams(dimension_semantics=sem),
    )


# ----------------------------- parameters ------------------------------------
def init_params(key):
    keys = iter(jax.random.split(key, 32))

    def nrm(shape, scale):
        return (scale * jax.random.normal(next(keys), shape)).astype(jnp.float32)

    def lin_w(shape):                 # fan_in = second-to-last dim
        return nrm(shape, 1.0 / math.sqrt(shape[-2]))

    def lin_b(shape):
        return nrm(shape, 0.01)

    return {
        # NOTE: random (not the module's zero) inits so every path is exercised.
        'w_in': lin_w((CKK, DIM)), 'b_in': lin_b((DIM,)),
        'freqs': jnp.exp(-2.0 * math.log(N_TIMESTEPS)
                         * jnp.arange(DIM // 2, dtype=jnp.float32) / DIM),
        'te_w1': lin_w((DIM, 4 * DIM)), 'te_b1': lin_b((4 * DIM,)),
        'te_w2': lin_w((4 * DIM, DIM)), 'te_b2': lin_b((DIM,)),
        'cls_emb': nrm((N_CLASSES + 1, DIM), 0.02),
        'om_w': lin_w((DIM, 2 * DIM)), 'om_b': lin_b((2 * DIM,)),
        'wout': lin_w((DIM, KKC)), 'bout': lin_b((KKC,)),
        # per-layer params stacked along a leading layer axis
        'cond_w': lin_w((N_LAYERS, DIM, 4 * DIM)), 'cond_b': lin_b((N_LAYERS, 4 * DIM)),
        'gate_w': lin_w((N_LAYERS, DIM, 2 * DIM)), 'gate_b': lin_b((N_LAYERS, 2 * DIM)),
        'wqkv': lin_w((N_LAYERS, DIM, QKVW)), 'bqkv': lin_b((N_LAYERS, QKVW)),
        'wo': lin_w((N_LAYERS, OED, DIM)), 'bo': lin_b((N_LAYERS, DIM)),
        'w1': lin_w((N_LAYERS, DIM, FD)), 'b1': lin_b((N_LAYERS, FD)),
        'w2': lin_w((N_LAYERS, FD, DIM)), 'b2': lin_b((N_LAYERS, DIM)),
    }


def pack_params(p):
    """One-time (outside jit) packing of weights into the kernel's 6 refs."""
    # Wqkv | W_ffw_up concatenated along lanes, bias appended as an extra row.
    wa = jnp.concatenate([p['wqkv'], p['w1']], axis=-1)                    # (L, DIM, 768)
    ba = jnp.concatenate([p['bqkv'], p['b1']], axis=-1)[:, None, :]        # (L, 1, 768)
    wa = jnp.concatenate([wa, ba], axis=1)                                 # (L, DIM+1, 768)
    # Wo / W_ffw_down stacked along a leading axis (both have K = OED = FD).
    wb_w = jnp.stack([p['wo'], p['w2']], axis=1)                           # (L, 2, OED, DIM)
    wb_b = jnp.stack([p['bo'], p['b2']], axis=1)[:, :, None, :]            # (L, 2, 1, DIM)
    wb = jnp.concatenate([wb_w, wb_b], axis=2).reshape(2 * N_LAYERS, OED + 1, DIM)
    # Output head padded to 128 lanes (lane-dense store), bias as extra row.
    wout = jnp.zeros((DIM + 1, OUT_PAD), jnp.float32)
    wout = wout.at[:DIM, :KKC].set(p['wout']).at[DIM, :KKC].set(p['bout'])
    # Packed conditioning projection: per layer [cond | gate], then out_mod.
    wc_parts, bc_parts = [], []
    for l in range(N_LAYERS):
        wc_parts += [p['cond_w'][l], p['gate_w'][l]]
        bc_parts += [p['cond_b'][l], p['gate_b'][l]]
    wc_parts.append(p['om_w'])
    bc_parts.append(p['om_b'])
    wc = jnp.concatenate(wc_parts, axis=-1)                                # (DIM, (6L+2)*DIM)
    bc = jnp.concatenate(bc_parts, axis=-1)
    # "+1" fold mask: 1 on every scale/gate slot, 0 on bias slots.
    one_slots = set()
    for l in range(N_LAYERS):
        one_slots |= {6 * l + 0, 6 * l + 2, 6 * l + 4, 6 * l + 5}
    one_slots.add(6 * N_LAYERS)
    plus1 = jnp.array([[1.0 if i in one_slots else 0.0]
                       for i in range(6 * N_LAYERS + 2)], jnp.float32)
    return {
        'w_in': p['w_in'], 'b_in': p['b_in'],
        'wa': wa, 'wb': wb, 'wout': wout,
        'wc': wc, 'bc': bc, 'plus1': plus1,
        'freqs': p['freqs'],
        'te_w1': p['te_w1'], 'te_b1': p['te_b1'],
        'te_w2': p['te_w2'], 'te_b2': p['te_b2'],
        'cls_emb': p['cls_emb'],
    }


# ----------------------------- forward (Pallas) -------------------------------
def forward(img, time, cls, packed):
    B = img.shape[0]
    fused = _make_fused_forward(B)

    # patchify NCHW -> (B*N_TOK, C*K*K); pixel order (c, kh, kw) to match the
    # Conv2d(dim, C, K, K) weight layout.
    p = img.reshape(B, INPUT_DIM, N_PATCH, KERNEL_SIZE, N_PATCH, KERNEL_SIZE)
    p = p.transpose(0, 2, 4, 1, 3, 5).reshape(B * N_TOK, CKK)

    # --- per-batch conditioning (B x 32-sized math; one packed matmul) ---
    t = time[:, None] * packed['freqs'][None, :]
    tf = jnp.concatenate([jnp.cos(t), jnp.sin(t)], axis=1)
    te = (jax.nn.silu(tf @ packed['te_w1'] + packed['te_b1'])
          @ packed['te_w2'] + packed['te_b2'])
    cc = jax.nn.silu(packed['cls_emb'][cls] + te)                        # (B, DIM)
    cond = (cc @ packed['wc'] + packed['bc']).reshape(B, 6 * N_LAYERS + 2, DIM)
    cond = cond + packed['plus1'][None]                                  # fold the "+1"
    cond = jnp.repeat(cond.transpose(1, 0, 2), N_TOK, axis=1)            # (6L+2, B*N_TOK, DIM)

    pos = sincos_embedding_2d(N_PATCH, N_PATCH, DIM).reshape(N_TOK, DIM)
    slot0 = jnp.tile(pos, (B, 1)) + packed['b_in'][None, :]              # pos + conv bias
    cond_all = jnp.concatenate([slot0[None], cond], axis=0)              # (NC, B*N_TOK, DIM)

    out = fused(p, cond_all, packed['w_in'], packed['wa'], packed['wb'],
                packed['wout'])                                          # (B*N_TOK, 128)
    out = out[:, :KKC]                                                   # drop lane padding
    # 'b (h w) (k s c) -> b c (h k) (w s)'
    out = out.reshape(B, N_PATCH, N_PATCH, KERNEL_SIZE, KERNEL_SIZE, INPUT_DIM)
    out = out.transpose(0, 5, 1, 3, 2, 4).reshape(B, INPUT_DIM, IM_SIZE, IM_SIZE)
    return out


# ----------------------------- pure-JAX reference -----------------------------
def reference_forward(img, time, cls, params):
    B = img.shape[0]
    p = img.reshape(B, INPUT_DIM, N_PATCH, KERNEL_SIZE, N_PATCH, KERNEL_SIZE)
    p = p.transpose(0, 2, 4, 1, 3, 5).reshape(B, N_TOK, CKK)
    pos = sincos_embedding_2d(N_PATCH, N_PATCH, DIM).reshape(1, N_TOK, DIM)
    x = p @ params['w_in'] + params['b_in'] + pos

    t = time[:, None] * params['freqs'][None, :]
    t = jnp.concatenate([jnp.cos(t), jnp.sin(t)], axis=1)
    t = (jax.nn.silu(t @ params['te_w1'] + params['te_b1'])
         @ params['te_w2'] + params['te_b2'])
    c = params['cls_emb'][cls] + t
    cc = jax.nn.silu(c)

    for l in range(N_LAYERS):
        cm = cc @ params['cond_w'][l] + params['cond_b'][l]
        gm = cc @ params['gate_w'][l] + params['gate_b'][l]
        s1, b1, s2, b2 = jnp.split(cm, 4, axis=-1)
        g1, g2 = jnp.split(gm, 2, axis=-1)
        x_ln = _modulate(_ln(x), s1[:, None], b1[:, None])
        qkv = x_ln @ params['wqkv'][l] + params['bqkv'][l]
        q = qkv[..., :OOED]
        k = jax.nn.softmax(qkv[..., OOED:2 * OOED], axis=1)
        v = qkv[..., 2 * OOED:]
        y = v
        for o in range(ORDER):
            qo = q[..., o * OED:(o + 1) * OED]
            ko = k[..., o * OED:(o + 1) * OED]
            ctx = jnp.sum(ko * y, axis=1, keepdims=True)
            y = qo * ctx
        hom = y @ params['wo'][l] + params['bo'][l]
        x = x + hom * (1.0 + g1[:, None])
        x_ln2 = _modulate(_ln(x), s2[:, None], b2[:, None])
        h = jax.nn.gelu(x_ln2 @ params['w1'][l] + params['b1'][l], approximate=False)
        x = x + (h @ params['w2'][l] + params['b2'][l]) * (1.0 + g2[:, None])

    om = cc @ params['om_w'] + params['om_b']
    s, bb = jnp.split(om, 2, axis=-1)
    out = _modulate(_ln(x), s[:, None], bb[:, None]) @ params['wout'] + params['bout']
    out = out.reshape(B, N_PATCH, N_PATCH, KERNEL_SIZE, KERNEL_SIZE, INPUT_DIM)
    out = out.transpose(0, 5, 1, 3, 2, 4).reshape(B, INPUT_DIM, IM_SIZE, IM_SIZE)
    return out


# ----------------------------- main -------------------------------------------
if __name__ == "__main__":
    key = jax.random.PRNGKey(0)
    kp, kimg, ktime, kcls = jax.random.split(key, 4)
    params = init_params(kp)
    packed = pack_params(params)          # one-time weight packing, outside jit

    B = 2
    img = jax.random.normal(kimg, (B, INPUT_DIM, IM_SIZE, IM_SIZE), jnp.float32)
    time = jax.random.uniform(ktime, (B,), jnp.float32, 0.0, float(N_TIMESTEPS))
    cls = jax.random.randint(kcls, (B,), 0, N_CLASSES + 1)

    out = jax.jit(forward)(img, time, cls, packed)
    out = jax.block_until_ready(out)

    ref = reference_forward(img, time, cls, params)
    assert out.shape == (B, INPUT_DIM, IM_SIZE, IM_SIZE), out.shape
    max_err = float(jnp.max(jnp.abs(out - ref)))
    assert jnp.allclose(out, ref, atol=5e-3, rtol=5e-3), f"max_err={max_err}"
    print("KERNEL_OK")
</pallas_src>

<mosaic_0001>
module attributes {stable_mosaic.version = 11 : i64} {
  func.func @kernel(%arg0: i32, %arg1: memref<32x64xf32, #tpu.memory_space<vmem>>, %arg2: memref<15x32x32xf32, #tpu.memory_space<vmem>>, %arg3: memref<64x32xf32, #tpu.memory_space<vmem>>, %arg4: memref<2x33x768xf32, #tpu.memory_space<vmem>>, %arg5: memref<4x129x32xf32, #tpu.memory_space<vmem>>, %arg6: memref<33x128xf32, #tpu.memory_space<vmem>>, %arg7: memref<32x128xf32, #tpu.memory_space<vmem>>) attributes {dimension_semantics = [#tpu.dimension_semantics<arbitrary>], iteration_bounds = array<i64: 1>, scalar_prefetch = 0 : i64, scratch_operands = 0 : i64, tpu.core_type = #tpu.core_type<tc>, window_params = [{transform_indices = @transform_0, window_bounds = array<i64: 32, 64>}, {transform_indices = @transform_1, window_bounds = array<i64: 15, 32, 32>}, {pipeline_mode = #tpu.pipeline_mode<synchronous>, transform_indices = @transform_2, window_bounds = array<i64: 64, 32>}, {pipeline_mode = #tpu.pipeline_mode<synchronous>, transform_indices = @transform_3, window_bounds = array<i64: 2, 33, 768>}, {pipeline_mode = #tpu.pipeline_mode<synchronous>, transform_indices = @transform_4, window_bounds = array<i64: 4, 129, 32>}, {pipeline_mode = #tpu.pipeline_mode<synchronous>, transform_indices = @transform_5, window_bounds = array<i64: 33, 128>}, {transform_indices = @transform_6, window_bounds = array<i64: 32, 128>}]} {
    %c0 = arith.constant 0 : index
    %c0_0 = arith.constant 0 : index
    %0 = vector.load %arg1[%c0, %c0_0] : memref<32x64xf32, #tpu.memory_space<vmem>>, vector<32x64xf32>
    %c0_1 = arith.constant 0 : index
    %c0_2 = arith.constant 0 : index
    %1 = vector.load %arg3[%c0_1, %c0_2] : memref<64x32xf32, #tpu.memory_space<vmem>>, vector<64x32xf32>
    %cst = arith.constant dense<0.000000e+00> : vector<32x32xf32>
    %2 = tpu.matmul %0, %1, %cst {dimension_numbers = #tpu.dot_dimension_numbers<[1], [0], [0], [1], [0, 0, 1, 1], [], []>} : vector<32x64xf32>, vector<64x32xf32>, vector<32x32xf32> -> vector<32x32xf32>
    %c0_3 = arith.constant 0 : index
    %c0_4 = arith.constant 0 : index
    %c0_5 = arith.constant 0 : index
    %3 = vector.load %arg2[%c0_3, %c0_4, %c0_5] : memref<15x32x32xf32, #tpu.memory_space<vmem>>, vector<1x32x32xf32>
    %4 = vector.shape_cast %3 : vector<1x32x32xf32> to vector<32x32xf32>
    %5 = arith.addf %2, %4 : vector<32x32xf32>
    %c1 = arith.constant 1 : index
    %c0_6 = arith.constant 0 : index
    %c0_7 = arith.constant 0 : index
    %6 = vector.load %arg2[%c1, %c0_6, %c0_7] : memref<15x32x32xf32, #tpu.memory_space<vmem>>, vector<1x32x32xf32>
    %7 = vector.shape_cast %6 : vector<1x32x32xf32> to vector<32x32xf32>
    %c2 = arith.constant 2 : index
    %c0_8 = arith.constant 0 : index
    %c0_9 = arith.constant 0 : index
    %8 = vector.load %arg2[%c2, %c0_8, %c0_9] : memref<15x32x32xf32, #tpu.memory_space<vmem>>, vector<1x32x32xf32>
    %9 = vector.shape_cast %8 : vector<1x32x32xf32> to vector<32x32xf32>
    %cst_10 = arith.constant dense<0.000000e+00> : vector<32xf32>
    %10 = vector.multi_reduction <add>, %5, %cst_10 [1] : vector<32x32xf32> to vector<32xf32>
    %11 = vector.shape_cast %10 : vector<32xf32> to vector<32x1xf32>
    %cst_11 = arith.constant 3.200000e+01 : f32
    %12 = vector.broadcast %cst_11 : f32 to vector<32x1xf32>
    %13 = arith.divf %11, %12 : vector<32x1xf32>
    %14 = vector.broadcast %13 : vector<32x1xf32> to vector<32x32xf32>
    %15 = arith.subf %5, %14 : vector<32x32xf32>
    %16 = arith.mulf %15, %15 : vector<32x32xf32>
    %cst_12 = arith.constant dense<0.000000e+00> : vector<32xf32>
    %17 = vector.multi_reduction <add>, %16, %cst_12 [1] : vector<32x32xf32> to vector<32xf32>
    %18 = vector.shape_cast %17 : vector<32xf32> to vector<32x1xf32>
    %cst_13 = arith.constant 3.200000e+01 : f32
    %19 = vector.broadcast %cst_13 : f32 to vector<32x1xf32>
    %20 = arith.divf %18, %19 : vector<32x1xf32>
    %cst_14 = arith.constant 9.99999997E-7 : f32
    %21 = vector.broadcast %cst_14 : f32 to vector<32x1xf32>
    %22 = arith.addf %20, %21 : vector<32x1xf32>
    %23 = math.rsqrt %22 : vector<32x1xf32>
    %24 = vector.broadcast %23 : vector<32x1xf32> to vector<32x32xf32>
    %25 = arith.mulf %24, %7 : vector<32x32xf32>
    %26 = arith.mulf %15, %25 : vector<32x32xf32>
    %27 = arith.addf %26, %9 : vector<32x32xf32>
    %c0_15 = arith.constant 0 : index
    %c0_16 = arith.constant 0 : index
    %c0_17 = arith.constant 0 : index
    %28 = vector.load %arg4[%c0_15, %c0_16, %c0_17] : memref<2x33x768xf32, #tpu.memory_space<vmem>>, vector<1x32x640xf32>
    %29 = vector.shape_cast %28 : vector<1x32x640xf32> to vector<32x640xf32>
    %cst_18 = arith.constant dense<0.000000e+00> : vector<32x640xf32>
    %30 = tpu.matmul %27, %29, %cst_18 {dimension_numbers = #tpu.dot_dimension_numbers<[1], [0], [0], [1], [0, 0, 1, 1], [], []>} : vector<32x32xf32>, vector<32x640xf32>, vector<32x640xf32> -> vector<32x640xf32>
    %c0_19 = arith.constant 0 : index
    %c32 = arith.constant 32 : index
    %c0_20 = arith.constant 0 : index
    %31 = vector.load %arg4[%c0_19, %c32, %c0_20] : memref<2x33x768xf32, #tpu.memory_space<vmem>>, vector<1x1x640xf32>
    %32 = vector.shape_cast %31 : vector<1x1x640xf32> to vector<1x640xf32>
    %33 = vector.broadcast %32 : vector<1x640xf32> to vector<32x640xf32>
    %34 = arith.addf %30, %33 : vector<32x640xf32>
    %35 = vector.extract_strided_slice %34 {offsets = [0, 0], sizes = [32, 256], strides = [1, 1]} : vector<32x640xf32> to vector<32x256xf32>
    %36 = vector.shape_cast %35 : vector<32x256xf32> to vector<2x16x256xf32>
    %37 = vector.extract_strided_slice %34 {offsets = [0, 256], sizes = [32, 256], strides = [1, 1]} : vector<32x640xf32> to vector<32x256xf32>
    %38 = vector.shape_cast %37 : vector<32x256xf32> to vector<2x16x256xf32>
    %39 = vector.extract_strided_slice %34 {offsets = [0, 512], sizes = [32, 128], strides = [1, 1]} : vector<32x640xf32> to vector<32x128xf32>
    %40 = vector.shape_cast %39 : vector<32x128xf32> to vector<2x16x128xf32>
    %cst_21 = arith.constant dense<0xFF800000> : vector<2x256xf32>
    %41 = vector.multi_reduction <maximumf>, %38, %cst_21 [1] : vector<2x16x256xf32> to vector<2x256xf32>
    %42 = vector.shape_cast %41 : vector<2x256xf32> to vector<2x1x256xf32>
    %43 = vector.broadcast %42 : vector<2x1x256xf32> to vector<2x16x256xf32>
    %44 = arith.subf %38, %43 : vector<2x16x256xf32>
    %45 = math.exp %44 : vector<2x16x256xf32>
    %cst_22 = arith.constant dense<0.000000e+00> : vector<2x256xf32>
    %46 = vector.multi_reduction <add>, %45, %cst_22 [1] : vector<2x16x256xf32> to vector<2x256xf32>
    %47 = vector.shape_cast %46 : vector<2x256xf32> to vector<2x1x256xf32>
    %48 = vector.broadcast %47 : vector<2x1x256xf32> to vector<2x16x256xf32>
    %49 = arith.divf %45, %48 : vector<2x16x256xf32>
    %50 = vector.extract_strided_slice %49 {offsets = [0, 0, 0], sizes = [2, 16, 128], strides = [1, 1, 1]} : vector<2x16x256xf32> to vector<2x16x128xf32>
    %51 = arith.mulf %50, %40 : vector<2x16x128xf32>
    %cst_23 = arith.constant dense<0.000000e+00> : vector<2x128xf32>
    %52 = vector.multi_reduction <add>, %51, %cst_23 [1] : vector<2x16x128xf32> to vector<2x128xf32>
    %53 = vector.shape_cast %52 : vector<2x128xf32> to vector<2x1x128xf32>
    %54 = vector.extract_strided_slice %36 {offsets = [0, 0, 0], sizes = [2, 16, 128], strides = [1, 1, 1]} : vector<2x16x256xf32> to vector<2x16x128xf32>
    %55 = vector.broadcast %53 : vector<2x1x128xf32> to vector<2x16x128xf32>
    %56 = arith.mulf %54, %55 : vector<2x16x128xf32>
    %57 = vector.extract_strided_slice %49 {offsets = [0, 0, 128], sizes = [2, 16, 128], strides = [1, 1, 1]} : vector<2x16x256xf32> to vector<2x16x128xf32>
    %58 = arith.mulf %57, %56 : vector<2x16x128xf32>
    %cst_24 = arith.constant dense<0.000000e+00> : vector<2x128xf32>
    %59 = vector.multi_reduction <add>, %58, %cst_24 [1] : vector<2x16x128xf32> to vector<2x128xf32>
    %60 = vector.shape_cast %59 : vector<2x128xf32> to vector<2x1x128xf32>
    %61 = vector.extract_strided_slice %36 {offsets = [0, 0, 128], sizes = [2, 16, 128], strides = [1, 1, 1]} : vector<2x16x256xf32> to vector<2x16x128xf32>
    %62 = vector.broadcast %60 : vector<2x1x128xf32> to vector<2x16x128xf32>
    %63 = arith.mulf %61, %62 : vector<2x16x128xf32>
    %64 = vector.shape_cast %63 : vector<2x16x128xf32> to vector<32x128xf32>
    %c0_25 = arith.constant 0 : index
    %c0_26 = arith.constant 0 : index
    %c0_27 = arith.constant 0 : index
    %65 = vector.load %arg5[%c0_25, %c0_26, %c0_27] : memref<4x129x32xf32, #tpu.memory_space<vmem>>, vector<1x128x32xf32>
    %66 = vector.shape_cast %65 : vector<1x128x32xf32> to vector<128x32xf32>
    %cst_28 = arith.constant dense<0.000000e+00> : vector<32x32xf32>
    %67 = tpu.matmul %64, %66, %cst_28 {dimension_numbers = #tpu.dot_dimension_numbers<[1], [0], [0], [1], [0, 0, 1, 1], [], []>} : vector<32x128xf32>, vector<128x32xf32>, vector<32x32xf32> -> vector<32x32xf32>
    %c0_29 = arith.constant 0 : index
    %c128 = arith.constant 128 : index
    %c0_30 = arith.constant 0 : index
    %68 = vector.load %arg5[%c0_29, %c128, %c0_30] : memref<4x129x32xf32, #tpu.memory_space<vmem>>, vector<1x1x32xf32>
    %69 = vector.shape_cast %68 : vector<1x1x32xf32> to vector<1x32xf32>
    %70 = vector.broadcast %69 : vector<1x32xf32> to vector<32x32xf32>
    %71 = arith.addf %67, %70 : vector<32x32xf32>
    %c5 = arith.constant 5 : index
    %c0_31 = arith.constant 0 : index
    %c0_32 = arith.constant 0 : index
    %72 = vector.load %arg2[%c5, %c0_31, %c0_32] : memref<15x32x32xf32, #tpu.memory_space<vmem>>, vector<1x32x32xf32>
    %73 = vector.shape_cast %72 : vector<1x32x32xf32> to vector<32x32xf32>
    %74 = arith.mulf %71, %73 : vector<32x32xf32>
    %75 = arith.addf %5, %74 : vector<32x32xf32>
    %c3 = arith.constant 3 : index
    %c0_33 = arith.constant 0 : index
    %c0_34 = arith.constant 0 : index
    %76 = vector.load %arg2[%c3, %c0_33, %c0_34] : memref<15x32x32xf32, #tpu.memory_space<vmem>>, vector<1x32x32xf32>
    %77 = vector.shape_cast %76 : vector<1x32x32xf32> to vector<32x32xf32>
    %c4 = arith.constant 4 : index
    %c0_35 = arith.constant 0 : index
    %c0_36 = arith.constant 0 : index
    %78 = vector.load %arg2[%c4, %c0_35, %c0_36] : memref<15x32x32xf32, #tpu.memory_space<vmem>>, vector<1x32x32xf32>
    %79 = vector.shape_cast %78 : vector<1x32x32xf32> to vector<32x32xf32>
    %cst_37 = arith.constant dense<0.000000e+00> : vector<32xf32>
    %80 = vector.multi_reduction <add>, %75, %cst_37 [1] : vector<32x32xf32> to vector<32xf32>
    %81 = vector.shape_cast %80 : vector<32xf32> to vector<32x1xf32>
    %cst_38 = arith.constant 3.200000e+01 : f32
    %82 = vector.broadcast %cst_38 : f32 to vector<32x1xf32>
    %83 = arith.divf %81, %82 : vector<32x1xf32>
    %84 = vector.broadcast %83 : vector<32x1xf32> to vector<32x32xf32>
    %85 = arith.subf %75, %84 : vector<32x32xf32>
    %86 = arith.mulf %85, %85 : vector<32x32xf32>
    %cst_39 = arith.constant dense<0.000000e+00> : vector<32xf32>
    %87 = vector.multi_reduction <add>, %86, %cst_39 [1] : vector<32x32xf32> to vector<32xf32>
    %88 = vector.shape_cast %87 : vector<32xf32> to vector<32x1xf32>
    %cst_40 = arith.constant 3.200000e+01 : f32
    %89 = vector.broadcast %cst_40 : f32 to vector<32x1xf32>
    %90 = arith.divf %88, %89 : vector<32x1xf32>
    %cst_41 = arith.constant 9.99999997E-7 : f32
    %91 = vector.broadcast %cst_41 : f32 to vector<32x1xf32>
    %92 = arith.addf %90, %91 : vector<32x1xf32>
    %93 = math.rsqrt %92 : vector<32x1xf32>
    %94 = vector.broadcast %93 : vector<32x1xf32> to vector<32x32xf32>
    %95 = arith.mulf %94, %77 : vector<32x32xf32>
    %96 = arith.mulf %85, %95 : vector<32x32xf32>
    %97 = arith.addf %96, %79 : vector<32x32xf32>
    %c0_42 = arith.constant 0 : index
    %c0_43 = arith.constant 0 : index
    %c640 = arith.constant 640 : index
    %98 = vector.load %arg4[%c0_42, %c0_43, %c640] : memref<2x33x768xf32, #tpu.memory_space<vmem>>, vector<1x32x128xf32>
    %99 = vector.shape_cast %98 : vector<1x32x128xf32> to vector<32x128xf32>
    %cst_44 = arith.constant dense<0.000000e+00> : vector<32x128xf32>
    %100 = tpu.matmul %97, %99, %cst_44 {dimension_numbers = #tpu.dot_dimension_numbers<[1], [0], [0], [1], [0, 0, 1, 1], [], []>} : vector<32x32xf32>, vector<32x128xf32>, vector<32x128xf32> -> vector<32x128xf32>
    %c0_45 = arith.constant 0 : index
    %c32_46 = arith.constant 32 : index
    %c640_47 = arith.constant 640 : index
    %101 = vector.load %arg4[%c0_45, %c32_46, %c640_47] : memref<2x33x768xf32, #tpu.memory_space<vmem>>, vector<1x1x128xf32>
    %102 = vector.shape_cast %101 : vector<1x1x128xf32> to vector<1x128xf32>
    %103 = vector.broadcast %102 : vector<1x128xf32> to vector<32x128xf32>
    %104 = arith.addf %100, %103 : vector<32x128xf32>
    %cst_48 = arith.constant 5.000000e-01 : f32
    %105 = vector.broadcast %cst_48 : f32 to vector<32x128xf32>
    %106 = arith.mulf %105, %104 : vector<32x128xf32>
    %cst_49 = arith.constant 4.471500e-02 : f32
    %107 = vector.broadcast %cst_49 : f32 to vector<32x128xf32>
    %108 = arith.mulf %107, %104 : vector<32x128xf32>
    %109 = arith.mulf %108, %104 : vector<32x128xf32>
    %110 = arith.mulf %109, %104 : vector<32x128xf32>
    %111 = arith.addf %104, %110 : vector<32x128xf32>
    %cst_50 = arith.constant 0.797884583 : f32
    %112 = vector.broadcast %cst_50 : f32 to vector<32x128xf32>
    %113 = arith.mulf %112, %111 : vector<32x128xf32>
    %114 = math.tanh %113 : vector<32x128xf32>
    %cst_51 = arith.constant 1.000000e+00 : f32
    %115 = vector.broadcast %cst_51 : f32 to vector<32x128xf32>
    %116 = arith.addf %115, %114 : vector<32x128xf32>
    %117 = arith.mulf %106, %116 : vector<32x128xf32>
    %c1_52 = arith.constant 1 : index
    %c0_53 = arith.constant 0 : index
    %c0_54 = arith.constant 0 : index
    %118 = vector.load %arg5[%c1_52, %c0_53, %c0_54] : memref<4x129x32xf32, #tpu.memory_space<vmem>>, vector<1x128x32xf32>
    %119 = vector.shape_cast %118 : vector<1x128x32xf32> to vector<128x32xf32>
    %cst_55 = arith.constant dense<0.000000e+00> : vector<32x32xf32>
    %120 = tpu.matmul %117, %119, %cst_55 {dimension_numbers = #tpu.dot_dimension_numbers<[1], [0], [0], [1], [0, 0, 1, 1], [], []>} : vector<32x128xf32>, vector<128x32xf32>, vector<32x32xf32> -> vector<32x32xf32>
    %c1_56 = arith.constant 1 : index
    %c128_57 = arith.constant 128 : index
    %c0_58 = arith.constant 0 : index
    %121 = vector.load %arg5[%c1_56, %c128_57, %c0_58] : memref<4x129x32xf32, #tpu.memory_space<vmem>>, vector<1x1x32xf32>
    %122 = vector.shape_cast %121 : vector<1x1x32xf32> to vector<1x32xf32>
    %123 = vector.broadcast %122 : vector<1x32xf32> to vector<32x32xf32>
    %124 = arith.addf %120, %123 : vector<32x32xf32>
    %c6 = arith.constant 6 : index
    %c0_59 = arith.constant 0 : index
    %c0_60 = arith.constant 0 : index
    %125 = vector.load %arg2[%c6, %c0_59, %c0_60] : memref<15x32x32xf32, #tpu.memory_space<vmem>>, vector<1x32x32xf32>
    %126 = vector.shape_cast %125 : vector<1x32x32xf32> to vector<32x32xf32>
    %127 = arith.mulf %124, %126 : vector<32x32xf32>
    %128 = arith.addf %75, %127 : vector<32x32xf32>
    %c7 = arith.constant 7 : index
    %c0_61 = arith.constant 0 : index
    %c0_62 = arith.constant 0 : index
    %129 = vector.load %arg2[%c7, %c0_61, %c0_62] : memref<15x32x32xf32, #tpu.memory_space<vmem>>, vector<1x32x32xf32>
    %130 = vector.shape_cast %129 : vector<1x32x32xf32> to vector<32x32xf32>
    %c8 = arith.constant 8 : index
    %c0_63 = arith.constant 0 : index
    %c0_64 = arith.constant 0 : index
    %131 = vector.load %arg2[%c8, %c0_63, %c0_64] : memref<15x32x32xf32, #tpu.memory_space<vmem>>, vector<1x32x32xf32>
    %132 = vector.shape_cast %131 : vector<1x32x32xf32> to vector<32x32xf32>
    %cst_65 = arith.constant dense<0.000000e+00> : vector<32xf32>
    %133 = vector.multi_reduction <add>, %128, %cst_65 [1] : vector<32x32xf32> to vector<32xf32>
    %134 = vector.shape_cast %133 : vector<32xf32> to vector<32x1xf32>
    %cst_66 = arith.constant 3.200000e+01 : f32
    %135 = vector.broadcast %cst_66 : f32 to vector<32x1xf32>
    %136 = arith.divf %134, %135 : vector<32x1xf32>
    %137 = vector.broadcast %136 : vector<32x1xf32> to vector<32x32xf32>
    %138 = arith.subf %128, %137 : vector<32x32xf32>
    %139 = arith.mulf %138, %138 : vector<32x32xf32>
    %cst_67 = arith.constant dense<0.000000e+00> : vector<32xf32>
    %140 = vector.multi_reduction <add>, %139, %cst_67 [1] : vector<32x32xf32> to vector<32xf32>
    %141 = vector.shape_cast %140 : vector<32xf32> to vector<32x1xf32>
    %cst_68 = arith.constant 3.200000e+01 : f32
    %142 = vector.broadcast %cst_68 : f32 to vector<32x1xf32>
    %143 = arith.divf %141, %142 : vector<32x1xf32>
    %cst_69 = arith.constant 9.99999997E-7 : f32
    %144 = vector.broadcast %cst_69 : f32 to vector<32x1xf32>
    %145 = arith.addf %143, %144 : vector<32x1xf32>
    %146 = math.rsqrt %145 : vector<32x1xf32>
    %147 = vector.broadcast %146 : vector<32x1xf32> to vector<32x32xf32>
    %148 = arith.mulf %147, %130 : vector<32x32xf32>
    %149 = arith.mulf %138, %148 : vector<32x32xf32>
    %150 = arith.addf %149, %132 : vector<32x32xf32>
    %c1_70 = arith.constant 1 : index
    %c0_71 = arith.constant 0 : index
    %c0_72 = arith.constant 0 : index
    %151 = vector.load %arg4[%c1_70, %c0_71, %c0_72] : memref<2x33x768xf32, #tpu.memory_space<vmem>>, vector<1x32x640xf32>
    %152 = vector.shape_cast %151 : vector<1x32x640xf32> to vector<32x640xf32>
    %cst_73 = arith.constant dense<0.000000e+00> : vector<32x640xf32>
    %153 = tpu.matmul %150, %152, %cst_73 {dimension_numbers = #tpu.dot_dimension_numbers<[1], [0], [0], [1], [0, 0, 1, 1], [], []>} : vector<32x32xf32>, vector<32x640xf32>, vector<32x640xf32> -> vector<32x640xf32>
    %c1_74 = arith.constant 1 : index
    %c32_75 = arith.constant 32 : index
    %c0_76 = arith.constant 0 : index
    %154 = vector.load %arg4[%c1_74, %c32_75, %c0_76] : memref<2x33x768xf32, #tpu.memory_space<vmem>>, vector<1x1x640xf32>
    %155 = vector.shape_cast %154 : vector<1x1x640xf32> to vector<1x640xf32>
    %156 = vector.broadcast %155 : vector<1x640xf32> to vector<32x640xf32>
    %157 = arith.addf %153, %156 : vector<32x640xf32>
    %158 = vector.extract_strided_slice %157 {offsets = [0, 0], sizes = [32, 256], strides = [1, 1]} : vector<32x640xf32> to vector<32x256xf32>
    %159 = vector.shape_cast %158 : vector<32x256xf32> to vector<2x16x256xf32>
    %160 = vector.extract_strided_slice %157 {offsets = [0, 256], sizes = [32, 256], strides = [1, 1]} : vector<32x640xf32> to vector<32x256xf32>
    %161 = vector.shape_cast %160 : vector<32x256xf32> to vector<2x16x256xf32>
    %162 = vector.extract_strided_slice %157 {offsets = [0, 512], sizes = [32, 128], strides = [1, 1]} : vector<32x640xf32> to vector<32x128xf32>
    %163 = vector.shape_cast %162 : vector<32x128xf32> to vector<2x16x128xf32>
    %cst_77 = arith.constant dense<0xFF800000> : vector<2x256xf32>
    %164 = vector.multi_reduction <maximumf>, %161, %cst_77 [1] : vector<2x16x256xf32> to vector<2x256xf32>
    %165 = vector.shape_cast %164 : vector<2x256xf32> to vector<2x1x256xf32>
    %166 = vector.broadcast %165 : vector<2x1x256xf32> to vector<2x16x256xf32>
    %167 = arith.subf %161, %166 : vector<2x16x256xf32>
    %168 = math.exp %167 : vector<2x16x256xf32>
    %cst_78 = arith.constant dense<0.000000e+00> : vector<2x256xf32>
    %169 = vector.multi_reduction <add>, %168, %cst_78 [1] : vector<2x16x256xf32> to vector<2x256xf32>
    %170 = vector.shape_cast %169 : vector<2x256xf32> to vector<2x1x256xf32>
    %171 = vector.broadcast %170 : vector<2x1x256xf32> to vector<2x16x256xf32>
    %172 = arith.divf %168, %171 : vector<2x16x256xf32>
    %173 = vector.extract_strided_slice %172 {offsets = [0, 0, 0], sizes = [2, 16, 128], strides = [1, 1, 1]} : vector<2x16x256xf32> to vector<2x16x128xf32>
    %174 = arith.mulf %173, %163 : vector<2x16x128xf32>
    %cst_79 = arith.constant dense<0.000000e+00> : vector<2x128xf32>
    %175 = vector.multi_reduction <add>, %174, %cst_79 [1] : vector<2x16x128xf32> to vector<2x128xf32>
    %176 = vector.shape_cast %175 : vector<2x128xf32> to vector<2x1x128xf32>
    %177 = vector.extract_strided_slice %159 {offsets = [0, 0, 0], sizes = [2, 16, 128], strides = [1, 1, 1]} : vector<2x16x256xf32> to vector<2x16x128xf32>
    %178 = vector.broadcast %176 : vector<2x1x128xf32> to vector<2x16x128xf32>
    %179 = arith.mulf %177, %178 : vector<2x16x128xf32>
    %180 = vector.extract_strided_slice %172 {offsets = [0, 0, 128], sizes = [2, 16, 128], strides = [1, 1, 1]} : vector<2x16x256xf32> to vector<2x16x128xf32>
    %181 = arith.mulf %180, %179 : vector<2x16x128xf32>
    %cst_80 = arith.constant dense<0.000000e+00> : vector<2x128xf32>
    %182 = vector.multi_reduction <add>, %181, %cst_80 [1] : vector<2x16x128xf32> to vector<2x128xf32>
    %183 = vector.shape_cast %182 : vector<2x128xf32> to vector<2x1x128xf32>
    %184 = vector.extract_strided_slice %159 {offsets = [0, 0, 128], sizes = [2, 16, 128], strides = [1, 1, 1]} : vector<2x16x256xf32> to vector<2x16x128xf32>
    %185 = vector.broadcast %183 : vector<2x1x128xf32> to vector<2x16x128xf32>
    %186 = arith.mulf %184, %185 : vector<2x16x128xf32>
    %187 = vector.shape_cast %186 : vector<2x16x128xf32> to vector<32x128xf32>
    %c2_81 = arith.constant 2 : index
    %c0_82 = arith.constant 0 : index
    %c0_83 = arith.constant 0 : index
    %188 = vector.load %arg5[%c2_81, %c0_82, %c0_83] : memref<4x129x32xf32, #tpu.memory_space<vmem>>, vector<1x128x32xf32>
    %189 = vector.shape_cast %188 : vector<1x128x32xf32> to vector<128x32xf32>
    %cst_84 = arith.constant dense<0.000000e+00> : vector<32x32xf32>
    %190 = tpu.matmul %187, %189, %cst_84 {dimension_numbers = #tpu.dot_dimension_numbers<[1], [0], [0], [1], [0, 0, 1, 1], [], []>} : vector<32x128xf32>, vector<128x32xf32>, vector<32x32xf32> -> vector<32x32xf32>
    %c2_85 = arith.constant 2 : index
    %c128_86 = arith.constant 128 : index
    %c0_87 = arith.constant 0 : index
    %191 = vector.load %arg5[%c2_85, %c128_86, %c0_87] : memref<4x129x32xf32, #tpu.memory_space<vmem>>, vector<1x1x32xf32>
    %192 = vector.shape_cast %191 : vector<1x1x32xf32> to vector<1x32xf32>
    %193 = vector.broadcast %192 : vector<1x32xf32> to vector<32x32xf32>
    %194 = arith.addf %190, %193 : vector<32x32xf32>
    %c11 = arith.constant 11 : index
    %c0_88 = arith.constant 0 : index
    %c0_89 = arith.constant 0 : index
    %195 = vector.load %arg2[%c11, %c0_88, %c0_89] : memref<15x32x32xf32, #tpu.memory_space<vmem>>, vector<1x32x32xf32>
    %196 = vector.shape_cast %195 : vector<1x32x32xf32> to vector<32x32xf32>
    %197 = arith.mulf %194, %196 : vector<32x32xf32>
    %198 = arith.addf %128, %197 : vector<32x32xf32>
    %c9 = arith.constant 9 : index
    %c0_90 = arith.constant 0 : index
    %c0_91 = arith.constant 0 : index
    %199 = vector.load %arg2[%c9, %c0_90, %c0_91] : memref<15x32x32xf32, #tpu.memory_space<vmem>>, vector<1x32x32xf32>
    %200 = vector.shape_cast %199 : vector<1x32x32xf32> to vector<32x32xf32>
    %c10 = arith.constant 10 : index
    %c0_92 = arith.constant 0 : index
    %c0_93 = arith.constant 0 : index
    %201 = vector.load %arg2[%c10, %c0_92, %c0_93] : memref<15x32x32xf32, #tpu.memory_space<vmem>>, vector<1x32x32xf32>
    %202 = vector.shape_cast %201 : vector<1x32x32xf32> to vector<32x32xf32>
    %cst_94 = arith.constant dense<0.000000e+00> : vector<32xf32>
    %203 = vector.multi_reduction <add>, %198, %cst_94 [1] : vector<32x32xf32> to vector<32xf32>
    %204 = vector.shape_cast %203 : vector<32xf32> to vector<32x1xf32>
    %cst_95 = arith.constant 3.200000e+01 : f32
    %205 = vector.broadcast %cst_95 : f32 to vector<32x1xf32>
    %206 = arith.divf %204, %205 : vector<32x1xf32>
    %207 = vector.broadcast %206 : vector<32x1xf32> to vector<32x32xf32>
    %208 = arith.subf %198, %207 : vector<32x32xf32>
    %209 = arith.mulf %208, %208 : vector<32x32xf32>
    %cst_96 = arith.constant dense<0.000000e+00> : vector<32xf32>
    %210 = vector.multi_reduction <add>, %209, %cst_96 [1] : vector<32x32xf32> to vector<32xf32>
    %211 = vector.shape_cast %210 : vector<32xf32> to vector<32x1xf32>
    %cst_97 = arith.constant 3.200000e+01 : f32
    %212 = vector.broadcast %cst_97 : f32 to vector<32x1xf32>
    %213 = arith.divf %211, %212 : vector<32x1xf32>
    %cst_98 = arith.constant 9.99999997E-7 : f32
    %214 = vector.broadcast %cst_98 : f32 to vector<32x1xf32>
    %215 = arith.addf %213, %214 : vector<32x1xf32>
    %216 = math.rsqrt %215 : vector<32x1xf32>
    %217 = vector.broadcast %216 : vector<32x1xf32> to vector<32x32xf32>
    %218 = arith.mulf %217, %200 : vector<32x32xf32>
    %219 = arith.mulf %208, %218 : vector<32x32xf32>
    %220 = arith.addf %219, %202 : vector<32x32xf32>
    %c1_99 = arith.constant 1 : index
    %c0_100 = arith.constant 0 : index
    %c640_101 = arith.constant 640 : index
    %221 = vector.load %arg4[%c1_99, %c0_100, %c640_101] : memref<2x33x768xf32, #tpu.memory_space<vmem>>, vector<1x32x128xf32>
    %222 = vector.shape_cast %221 : vector<1x32x128xf32> to vector<32x128xf32>
    %cst_102 = arith.constant dense<0.000000e+00> : vector<32x128xf32>
    %223 = tpu.matmul %220, %222, %cst_102 {dimension_numbers = #tpu.dot_dimension_numbers<[1], [0], [0], [1], [0, 0, 1, 1], [], []>} : vector<32x32xf32>, vector<32x128xf32>, vector<32x128xf32> -> vector<32x128xf32>
    %c1_103 = arith.constant 1 : index
    %c32_104 = arith.constant 32 : index
    %c640_105 = arith.constant 640 : index
    %224 = vector.load %arg4[%c1_103, %c32_104, %c640_105] : memref<2x33x768xf32, #tpu.memory_space<vmem>>, vector<1x1x128xf32>
    %225 = vector.shape_cast %224 : vector<1x1x128xf32> to vector<1x128xf32>
    %226 = vector.broadcast %225 : vector<1x128xf32> to vector<32x128xf32>
    %227 = arith.addf %223, %226 : vector<32x128xf32>
    %cst_106 = arith.constant 5.000000e-01 : f32
    %228 = vector.broadcast %cst_106 : f32 to vector<32x128xf32>
    %229 = arith.mulf %228, %227 : vector<32x128xf32>
    %cst_107 = arith.constant 4.471500e-02 : f32
    %230 = vector.broadcast %cst_107 : f32 to vector<32x128xf32>
    %231 = arith.mulf %230, %227 : vector<32x128xf32>
    %232 = arith.mulf %231, %227 : vector<32x128xf32>
    %233 = arith.mulf %232, %227 : vector<32x128xf32>
    %234 = arith.addf %227, %233 : vector<32x128xf32>
    %cst_108 = arith.constant 0.797884583 : f32
    %235 = vector.broadcast %cst_108 : f32 to vector<32x128xf32>
    %236 = arith.mulf %235, %234 : vector<32x128xf32>
    %237 = math.tanh %236 : vector<32x128xf32>
    %cst_109 = arith.constant 1.000000e+00 : f32
    %238 = vector.broadcast %cst_109 : f32 to vector<32x128xf32>
    %239 = arith.addf %238, %237 : vector<32x128xf32>
    %240 = arith.mulf %229, %239 : vector<32x128xf32>
    %c3_110 = arith.constant 3 : index
    %c0_111 = arith.constant 0 : index
    %c0_112 = arith.constant 0 : index
    %241 = vector.load %arg5[%c3_110, %c0_111, %c0_112] : memref<4x129x32xf32, #tpu.memory_space<vmem>>, vector<1x128x32xf32>
    %242 = vector.shape_cast %241 : vector<1x128x32xf32> to vector<128x32xf32>
    %cst_113 = arith.constant dense<0.000000e+00> : vector<32x32xf32>
    %243 = tpu.matmul %240, %242, %cst_113 {dimension_numbers = #tpu.dot_dimension_numbers<[1], [0], [0], [1], [0, 0, 1, 1], [], []>} : vector<32x128xf32>, vector<128x32xf32>, vector<32x32xf32> -> vector<32x32xf32>
    %c3_114 = arith.constant 3 : index
    %c128_115 = arith.constant 128 : index
    %c0_116 = arith.constant 0 : index
    %244 = vector.load %arg5[%c3_114, %c128_115, %c0_116] : memref<4x129x32xf32, #tpu.memory_space<vmem>>, vector<1x1x32xf32>
    %245 = vector.shape_cast %244 : vector<1x1x32xf32> to vector<1x32xf32>
    %246 = vector.broadcast %245 : vector<1x32xf32> to vector<32x32xf32>
    %247 = arith.addf %243, %246 : vector<32x32xf32>
    %c12 = arith.constant 12 : index
    %c0_117 = arith.constant 0 : index
    %c0_118 = arith.constant 0 : index
    %248 = vector.load %arg2[%c12, %c0_117, %c0_118] : memref<15x32x32xf32, #tpu.memory_space<vmem>>, vector<1x32x32xf32>
    %249 = vector.shape_cast %248 : vector<1x32x32xf32> to vector<32x32xf32>
    %250 = arith.mulf %247, %249 : vector<32x32xf32>
    %251 = arith.addf %198, %250 : vector<32x32xf32>
    %c13 = arith.constant 13 : index
    %c0_119 = arith.constant 0 : index
    %c0_120 = arith.constant 0 : index
    %252 = vector.load %arg2[%c13, %c0_119, %c0_120] : memref<15x32x32xf32, #tpu.memory_space<vmem>>, vector<1x32x32xf32>
    %253 = vector.shape_cast %252 : vector<1x32x32xf32> to vector<32x32xf32>
    %c14 = arith.constant 14 : index
    %c0_121 = arith.constant 0 : index
    %c0_122 = arith.constant 0 : index
    %254 = vector.load %arg2[%c14, %c0_121, %c0_122] : memref<15x32x32xf32, #tpu.memory_space<vmem>>, vector<1x32x32xf32>
    %255 = vector.shape_cast %254 : vector<1x32x32xf32> to vector<32x32xf32>
    %cst_123 = arith.constant dense<0.000000e+00> : vector<32xf32>
    %256 = vector.multi_reduction <add>, %251, %cst_123 [1] : vector<32x32xf32> to vector<32xf32>
    %257 = vector.shape_cast %256 : vector<32xf32> to vector<32x1xf32>
    %cst_124 = arith.constant 3.200000e+01 : f32
    %258 = vector.broadcast %cst_124 : f32 to vector<32x1xf32>
    %259 = arith.divf %257, %258 : vector<32x1xf32>
    %260 = vector.broadcast %259 : vector<32x1xf32> to vector<32x32xf32>
    %261 = arith.subf %251, %260 : vector<32x32xf32>
    %262 = arith.mulf %261, %261 : vector<32x32xf32>
    %cst_125 = arith.constant dense<0.000000e+00> : vector<32xf32>
    %263 = vector.multi_reduction <add>, %262, %cst_125 [1] : vector<32x32xf32> to vector<32xf32>
    %264 = vector.shape_cast %263 : vector<32xf32> to vector<32x1xf32>
    %cst_126 = arith.constant 3.200000e+01 : f32
    %265 = vector.broadcast %cst_126 : f32 to vector<32x1xf32>
    %266 = arith.divf %264, %265 : vector<32x1xf32>
    %cst_127 = arith.constant 9.99999997E-7 : f32
    %267 = vector.broadcast %cst_127 : f32 to vector<32x1xf32>
    %268 = arith.addf %266, %267 : vector<32x1xf32>
    %269 = math.rsqrt %268 : vector<32x1xf32>
    %270 = vector.broadcast %269 : vector<32x1xf32> to vector<32x32xf32>
    %271 = arith.mulf %270, %253 : vector<32x32xf32>
    %272 = arith.mulf %261, %271 : vector<32x32xf32>
    %273 = arith.addf %272, %255 : vector<32x32xf32>
    %c0_128 = arith.constant 0 : index
    %c0_129 = arith.constant 0 : index
    %274 = vector.load %arg6[%c0_128, %c0_129] : memref<33x128xf32, #tpu.memory_space<vmem>>, vector<32x128xf32>
    %cst_130 = arith.constant dense<0.000000e+00> : vector<32x128xf32>
    %275 = tpu.matmul %273, %274, %cst_130 {dimension_numbers = #tpu.dot_dimension_numbers<[1], [0], [0], [1], [0, 0, 1, 1], [], []>} : vector<32x32xf32>, vector<32x128xf32>, vector<32x128xf32> -> vector<32x128xf32>
    %c32_131 = arith.constant 32 : index
    %c0_132 = arith.constant 0 : index
    %276 = vector.load %arg6[%c32_131, %c0_132] : memref<33x128xf32, #tpu.memory_space<vmem>>, vector<1x128xf32>
    %277 = vector.broadcast %276 : vector<1x128xf32> to vector<32x128xf32>
    %278 = arith.addf %275, %277 : vector<32x128xf32>
    %c0_133 = arith.constant 0 : index
    %c0_134 = arith.constant 0 : index
    %279 = vector.load %arg7[%c0_133, %c0_134] : memref<32x128xf32, #tpu.memory_space<vmem>>, vector<32x128xf32>
    tpu.vector_store %arg7[%c0_133, %c0_134], %278 {strides = array<i32>} : memref<32x128xf32, #tpu.memory_space<vmem>>, vector<32x128xf32>,
    return
  }
  func.func @transform_0(%arg0: i32) -> (i32, i32) {
    %c0_i32 = arith.constant 0 : i32
    %c0_i32_0 = arith.constant 0 : i32
    return %arg0, %c0_i32 : i32, i32
  }
  func.func @transform_1(%arg0: i32) -> (i32, i32, i32) {
    %c0_i32 = arith.constant 0 : i32
    %c0_i32_0 = arith.constant 0 : i32
    %c0_i32_1 = arith.constant 0 : i32
    return %c0_i32, %arg0, %c0_i32_0 : i32, i32, i32
  }
  func.func @transform_2(%arg0: i32) -> (i32, i32) {
    %c0_i32 = arith.constant 0 : i32
    %c0_i32_0 = arith.constant 0 : i32
    %c0_i32_1 = arith.constant 0 : i32
    return %c0_i32, %c0_i32_0 : i32, i32
  }
  func.func @transform_3(%arg0: i32) -> (i32, i32, i32) {
    %c0_i32 = arith.constant 0 : i32
    %c0_i32_0 = arith.constant 0 : i32
    %c0_i32_1 = arith.constant 0 : i32
    %c0_i32_2 = arith.constant 0 : i32
    return %c0_i32, %c0_i32_0, %c0_i32_1 : i32, i32, i32
  }
  func.func @transform_4(%arg0: i32) -> (i32, i32, i32) {
    %c0_i32 = arith.constant 0 : i32
    %c0_i32_0 = arith.constant 0 : i32
    %c0_i32_1 = arith.constant 0 : i32
    %c0_i32_2 = arith.constant 0 : i32
    return %c0_i32, %c0_i32_0, %c0_i32_1 : i32, i32, i32
  }
  func.func @transform_5(%arg0: i32) -> (i32, i32) {
    %c0_i32 = arith.constant 0 : i32
    %c0_i32_0 = arith.constant 0 : i32
    %c0_i32_1 = arith.constant 0 : i32
    return %c0_i32, %c0_i32_0 : i32, i32
  }
  func.func @transform_6(%arg0: i32) -> (i32, i32) {
    %c0_i32 = arith.constant 0 : i32
    %c0_i32_0 = arith.constant 0 : i32
    return %arg0, %c0_i32 : i32, i32
  }
}

</mosaic_0001>

<llo_original>
// kernel: forward.1
$region0: #{forward.1}
  #allocation0 [shape = 'u32[]', space=smem, size = 0x4, offset = 0x4, fixed_abs, tag = 'smem constant byte address 0x4 - core index']
  #allocation1 [shape = 'u32[72,128]{1,0:T(1,128)}', space=vmem, size = 0x9000, scoped, tag = 'internal scratch']
  %s0 = inlined_call_operand.vmem [shape: f32[32,64], index: 0, kind: input, shape index: {}]
  %s1 = inlined_call_operand.vmem [shape: f32[15,32,32], index: 1, kind: input, shape index: {}]
  %s2 = inlined_call_operand.vmem [shape: f32[64,32], index: 2, kind: input, shape index: {}]
  %s3 = inlined_call_operand.vmem [shape: f32[2,33,768], index: 3, kind: input, shape index: {}]
  %s4 = inlined_call_operand.vmem [shape: f32[4,129,32], index: 4, kind: input, shape index: {}]
  %s5 = inlined_call_operand.vmem [shape: f32[33,128], index: 5, kind: input, shape index: {}]
  %s6 = inlined_call_operand.vmem [shape: f32[32,128], index: 6, kind: output, shape index: {}]
  %s7 = sld [smem:[#allocation0]]
  $region34: #{forward.1} parent=0
    _
  %s9 = ssub.s32 1, %s7
  %s10 = scalar_select 0, %s9, %s7
  // Predicated region
  $region2: #{forward.1} parent=0 // pred_check
    _
  $region3: #{forward.1} parent=0 // pred_check_branch
    %12 = sbr.rel (0) target = $region5
  $region4: #{forward.1} parent=0 // pred_region
    _
  $region5: #{forward.1} parent=0 // pred_fallthru
    _
  // Predicated region
  $region6: #{forward.1} parent=0 // pred_check
    _
  $region7: #{forward.1} parent=0 // pred_check_branch
    %14 = sbr.rel (0) target = $region9
  $region8: #{forward.1} parent=0 // pred_region
    _
  $region9: #{forward.1} parent=0 // pred_fallthru
    _
  // Predicated region
  $region10: #{forward.1} parent=0 // pred_check
    _
  $region11: #{forward.1} parent=0 // pred_check_branch
    %16 = sbr.rel (0) target = $region13
  $region12: #{forward.1} parent=0 // pred_region
    _
  $region13: #{forward.1} parent=0 // pred_fallthru
    _
  // Predicated region
  $region14: #{forward.1} parent=0 // pred_check
    _
  $region15: #{forward.1} parent=0 // pred_check_branch
    %18 = sbr.rel (0) target = $region17
  $region16: #{forward.1} parent=0 // pred_region
    _
  $region17: #{forward.1} parent=0 // pred_fallthru
    _
  // Predicated region
  $region18: #{forward.1} parent=0 // pred_check
    _
  $region19: #{forward.1} parent=0 // pred_check_branch
    %20 = sbr.rel (0) target = $region21
  $region20: #{forward.1} parent=0 // pred_region
    _
  $region21: #{forward.1} parent=0 // pred_fallthru
    _
  // Predicated region
  $region22: #{forward.1} parent=0 // pred_check
    _
  $region23: #{forward.1} parent=0 // pred_check_branch
    %22 = sbr.rel (0) target = $region25
  $region24: #{forward.1} parent=0 // pred_region
    _
  $region25: #{forward.1} parent=0 // pred_fallthru
    _
  %v23 = vld [vmem:[%s0] sm:$0xff]
  %v24 = vld [vmem:[%s0 + $0x8] sm:$0xff]
  %v25 = vld [vmem:[%s0 + $0x10] sm:$0xff]
  %v26 = vld [vmem:[%s0 + $0x18] sm:$0xff]
  %v27 = vld [vmem:[%s2] sm:$0xff]
  %v28 = vld [vmem:[%s2 + $0x8] sm:$0xff]
  %v29 = vld [vmem:[%s2 + $0x10] sm:$0xff]
  %v30 = vld [vmem:[%s2 + $0x18] sm:$0xff]
  %v31 = vld [vmem:[%s2 + $0x20] sm:$0xff]
  %v32 = vld [vmem:[%s2 + $0x28] sm:$0xff]
  %v33 = vld [vmem:[%s2 + $0x30] sm:$0xff]
  %v34 = vld [vmem:[%s2 + $0x38] sm:$0xff]
  %v35 = vld [vmem:[%s1] sm:$0xff]
  %v36 = vld [vmem:[%s1 + $0x8] sm:$0xff]
  %v37 = vld [vmem:[%s1 + $0x10] sm:$0xff]
  %v38 = vld [vmem:[%s1 + $0x18] sm:$0xff]
  %vm39 = vcmask 523264
  %v41 = vsel %vm39, %v23, 0
  %v44 = vsel %vm39, %v24, 0
  %v47 = vsel %vm39, %v25, 0
  %v50 = vsel %vm39, %v26, 0
  %52 = vmatpush.msra.mxu0 0.0
  %53 = vmatpush.msra.mxu0 0.0
  %54 = vmatpush.msra.mxu0 0.0
  %55 = vmatpush.msra.mxu0 0.0
  %56 = vmatpush.msra.mxu0 0.0
  %57 = vmatpush.msra.mxu0 0.0
  %58 = vmatpush.msra.mxu0 0.0
  %59 = vmatpush.msra.mxu0 0.0
  %60 = vmatpush.msra.mxu0 %v34
  %61 = vmatpush.msra.mxu0 %v33
  %62 = vmatpush.msra.mxu0 %v32
  %63 = vmatpush.msra.mxu0 %v31
  %64 = vmatpush.msra.mxu0 %v30
  %65 = vmatpush.msra.mxu0 %v29
  %66 = vmatpush.msra.mxu0 %v28
  %67 = vmatpush.msra.mxu0 %v27
  %68 = vmatmul.f32.gmra.mxu0 %v41
  %v69 = vpop.f32.mrf.mxu0
  %v70 = vadd.f32 %v35, %v69
  %71 = vmatmul.f32.gmra.mxu0 %v44
  %v72 = vpop.f32.mrf.mxu0
  %v73 = vadd.f32 %v36, %v72
  %74 = vmatmul.f32.gmra.mxu0 %v47
  %v75 = vpop.f32.mrf.mxu0
  %v76 = vadd.f32 %v37, %v75
  %77 = vmatmul.f32.gmra.mxu0 %v50
  %v78 = vpop.f32.mrf.mxu0
  %v79 = vadd.f32 %v38, %v78
  %80 = vdwg.mxu0
  %s81 = scalar_lea.vmem %s1, 32
  %v82 = vld [vmem:[%s81] sm:$0xff]
  %v83 = vld [vmem:[%s81 + $0x8] sm:$0xff]
  %v84 = vld [vmem:[%s81 + $0x10] sm:$0xff]
  %v85 = vld [vmem:[%s81 + $0x18] sm:$0xff]
  %s86 = scalar_lea.vmem %s1, 64
  %v87 = vld [vmem:[%s86] sm:$0xff]
  %v88 = vld [vmem:[%s86 + $0x8] sm:$0xff]
  %v89 = vld [vmem:[%s86 + $0x10] sm:$0xff]
  %v90 = vld [vmem:[%s86 + $0x18] sm:$0xff]
  %vm91 = vcmask 261120
  %v92 = vsel %vm91, %v70, 0.0
  %93 = vadd.xlane.f32.xlu0 %v92
  %v94 = vpop.xlane.xlu0 %93
  %v95 = vsel %vm91, %v73, 0.0
  %96 = vadd.xlane.f32.xlu0 %v95
  %v97 = vpop.xlane.xlu0 %96
  %v98 = vsel %vm91, %v76, 0.0
  %99 = vadd.xlane.f32.xlu0 %v98
  %v100 = vpop.xlane.xlu0 %99
  %v101 = vsel %vm91, %v79, 0.0
  %102 = vadd.xlane.f32.xlu0 %v101
  %v103 = vpop.xlane.xlu0 %102
  %v104 = vrcp.pop 32.0
  %v105 = vmul.f32 32.0, %v104
  %v106 = vsub.f32 1.0, %v105
  %v107 = vmul.f32 %v104, %v106
  %v108 = vadd.f32 %v104, %v107
  %vm109 = vweird.f32 %v104
  %v110 = vsel %vm109, %v104, %v108
  %v111 = vmul.f32 %v94, %v110
  %v112 = vmul.f32 %v97, %v110
  %v113 = vmul.f32 %v100, %v110
  %v114 = vmul.f32 %v103, %v110
  %v115 = vsub.f32 %v70, %v111
  %v116 = vsub.f32 %v73, %v112
  %v117 = vsub.f32 %v76, %v113
  %v118 = vsub.f32 %v79, %v114
  %v119 = vmul.f32 %v115, %v115
  %v120 = vmul.f32 %v116, %v116
  %v121 = vmul.f32 %v117, %v117
  %v122 = vmul.f32 %v118, %v118
  %v123 = vsel %vm91, %v119, 0.0
  %124 = vadd.xlane.f32.xlu0 %v123
  %v125 = vpop.xlane.xlu0 %124
  %v126 = vsel %vm91, %v120, 0.0
  %127 = vadd.xlane.f32.xlu0 %v126
  %v128 = vpop.xlane.xlu0 %127
  %v129 = vsel %vm91, %v121, 0.0
  %130 = vadd.xlane.f32.xlu0 %v129
  %v131 = vpop.xlane.xlu0 %130
  %v132 = vsel %vm91, %v122, 0.0
  %133 = vadd.xlane.f32.xlu0 %v132
  %v134 = vpop.xlane.xlu0 %133
  %v135 = vmul.f32 %v125, %v110
  %v136 = vmul.f32 %v128, %v110
  %v137 = vmul.f32 %v131, %v110
  %v138 = vmul.f32 %v134, %v110
  %v139 = vadd.f32 %v135, 1e-06
  %v140 = vadd.f32 %v136, 1e-06
  %v141 = vadd.f32 %v137, 1e-06
  %v142 = vadd.f32 %v138, 1e-06
  %v143 = vrsqrt.pop %v139
  %v144 = vmul.f32 %v143, %v139
  %v145 = vmul.f32 %v144, %v143
  %v146 = vmul.f32 0.5, %v145
  %v147 = vsub.f32 1.5, %v146
  %v148 = vmul.f32 %v143, %v147
  %vm149 = vweird.f32 %v139
  %vm150 = vweird.f32 %v143
  %vm151 = vmor %vm149, %vm150
  %v152 = vsel %vm151, %v143, %v148
  %v153 = vrsqrt.pop %v140
  %v154 = vmul.f32 %v153, %v140
  %v155 = vmul.f32 %v154, %v153
  %v156 = vmul.f32 0.5, %v155
  %v157 = vsub.f32 1.5, %v156
  %v158 = vmul.f32 %v153, %v157
  %vm159 = vweird.f32 %v140
  %vm160 = vweird.f32 %v153
  %vm161 = vmor %vm159, %vm160
  %v162 = vsel %vm161, %v153, %v158
  %v163 = vrsqrt.pop %v141
  %v164 = vmul.f32 %v163, %v141
  %v165 = vmul.f32 %v164, %v163
  %v166 = vmul.f32 0.5, %v165
  %v167 = vsub.f32 1.5, %v166
  %v168 = vmul.f32 %v163, %v167
  %vm169 = vweird.f32 %v141
  %vm170 = vweird.f32 %v163
  %vm171 = vmor %vm169, %vm170
  %v172 = vsel %vm171, %v163, %v168
  %v173 = vrsqrt.pop %v142
  %v174 = vmul.f32 %v173, %v142
  %v175 = vmul.f32 %v174, %v173
  %v176 = vmul.f32 0.5, %v175
  %v177 = vsub.f32 1.5, %v176
  %v178 = vmul.f32 %v173, %v177
  %vm179 = vweird.f32 %v142
  %vm180 = vweird.f32 %v173
  %vm181 = vmor %vm179, %vm180
  %v182 = vsel %vm181, %v173, %v178
  %v183 = vmul.f32 %v152, %v82
  %v184 = vmul.f32 %v162, %v83
  %v185 = vmul.f32 %v172, %v84
  %v186 = vmul.f32 %v182, %v85
  %v187 = vmul.f32 %v115, %v183
  %v188 = vmul.f32 %v116, %v184
  %v189 = vmul.f32 %v117, %v185
  %v190 = vmul.f32 %v118, %v186
  %v191 = vadd.f32 %v187, %v87
  %v192 = vadd.f32 %v188, %v88
  %v193 = vadd.f32 %v189, %v89
  %v194 = vadd.f32 %v190, %v90
  %v195 = vld [vmem:[%s3] sm:$0xff]
  %v196 = vld [vmem:[%s3 + $0x8] sm:$0xff]
  %v197 = vld [vmem:[%s3 + $0x10] sm:$0xff]
  %v198 = vld [vmem:[%s3 + $0x18] sm:$0xff]
  %v199 = vld [vmem:[%s3 + $0x20] sm:$0xff]
  %v200 = vld [vmem:[%s3 + $0x30] sm:$0xff]
  %v201 = vld [vmem:[%s3 + $0x38] sm:$0xff]
  %v202 = vld [vmem:[%s3 + $0x40] sm:$0xff]
  %v203 = vld [vmem:[%s3 + $0x48] sm:$0xff]
  %v204 = vld [vmem:[%s3 + $0x50] sm:$0xff]
  %v205 = vld [vmem:[%s3 + $0x60] sm:$0xff]
  %v206 = vld [vmem:[%s3 + $0x68] sm:$0xff]
  %v207 = vld [vmem:[%s3 + $0x70] sm:$0xff]
  %v208 = vld [vmem:[%s3 + $0x78] sm:$0xff]
  %v209 = vld [vmem:[%s3 + $0x80] sm:$0xff]
  %v210 = vld [vmem:[%s3 + $0x90] sm:$0xff]
  %v211 = vld [vmem:[%s3 + $0x98] sm:$0xff]
  %v212 = vld [vmem:[%s3 + $0xa0] sm:$0xff]
  %v213 = vld [vmem:[%s3 + $0xa8] sm:$0xff]
  %v214 = vld [vmem:[%s3 + $0xb0] sm:$0xff]
  %s215 = scalar_lea.vmem %s3, 192
  %v216 = vld [vmem:[%s215] ss:$8 sm:$0xf]
  %v217 = vld [vmem:[%s215] ss:$8 sm:$0x10]
  %v218 = vor.u32 %v216, %v217
  %v220 = vperm.slane %v218, 0
  %v221 = vperm.slane %v218, 1
  %v222 = vperm.slane %v218, 2
  %v223 = vperm.slane %v218, 3
  %v224 = vperm.slane %v218, 4
  %v231 = vsel %vm91, %v191, 0
  %v234 = vsel %vm91, %v192, 0
  %v237 = vsel %vm91, %v193, 0
  %v240 = vsel %vm91, %v194, 0
  %242 = vmatpush.msra.mxu0 0.0
  %243 = vmatpush.msra.mxu0 0.0
  %244 = vmatpush.msra.mxu0 0.0
  %245 = vmatpush.msra.mxu0 0.0
  %246 = vmatpush.msra.mxu0 0.0
  %247 = vmatpush.msra.mxu0 0.0
  %248 = vmatpush.msra.mxu0 0.0
  %249 = vmatpush.msra.mxu0 0.0
  %250 = vmatpush.msra.mxu0 0.0
  %251 = vmatpush.msra.mxu0 0.0
  %252 = vmatpush.msra.mxu0 0.0
  %253 = vmatpush.msra.mxu0 0.0
  %254 = vmatpush.msra.mxu0 %v210
  %255 = vmatpush.msra.mxu0 %v205
  %256 = vmatpush.msra.mxu0 %v200
  %257 = vmatpush.msra.mxu0 %v195
  %258 = vmatmul.f32.gmra.mxu0 %v231
  %v259 = vpop.f32.mrf.mxu0
  %v260 = vadd.f32 %v220, %v259
  %261 = vmatmul.f32.gmra.mxu0 %v234
  %v262 = vpop.f32.mrf.mxu0
  %v263 = vadd.f32 %v220, %v262
  %264 = vmatmul.f32.gmra.mxu0 %v237
  %v265 = vpop.f32.mrf.mxu0
  %v266 = vadd.f32 %v220, %v265
  %267 = vmatmul.f32.gmra.mxu0 %v240
  %v268 = vpop.f32.mrf.mxu0
  %v269 = vadd.f32 %v220, %v268
  %270 = vdwg.mxu0
  %271 = vmatpush.msra.mxu0 0.0
  %272 = vmatpush.msra.mxu0 0.0
  %273 = vmatpush.msra.mxu0 0.0
  %274 = vmatpush.msra.mxu0 0.0
  %275 = vmatpush.msra.mxu0 0.0
  %276 = vmatpush.msra.mxu0 0.0
  %277 = vmatpush.msra.mxu0 0.0
  %278 = vmatpush.msra.mxu0 0.0
  %279 = vmatpush.msra.mxu0 0.0
  %280 = vmatpush.msra.mxu0 0.0
  %281 = vmatpush.msra.mxu0 0.0
  %282 = vmatpush.msra.mxu0 0.0
  %283 = vmatpush.msra.mxu0 %v211
  %284 = vmatpush.msra.mxu0 %v206
  %285 = vmatpush.msra.mxu0 %v201
  %286 = vmatpush.msra.mxu0 %v196
  %287 = vmatmul.f32.gmra.mxu0 %v231
  %v288 = vpop.f32.mrf.mxu0
  %v289 = vadd.f32 %v221, %v288
  %290 = vmatmul.f32.gmra.mxu0 %v234
  %v291 = vpop.f32.mrf.mxu0
  %v292 = vadd.f32 %v221, %v291
  %293 = vmatmul.f32.gmra.mxu0 %v237
  %v294 = vpop.f32.mrf.mxu0
  %v295 = vadd.f32 %v221, %v294
  %296 = vmatmul.f32.gmra.mxu0 %v240
  %v297 = vpop.f32.mrf.mxu0
  %v298 = vadd.f32 %v221, %v297
  %299 = vdwg.mxu0
  %300 = vmatpush.msra.mxu0 0.0
  %301 = vmatpush.msra.mxu0 0.0
  %302 = vmatpush.msra.mxu0 0.0
  %303 = vmatpush.msra.mxu0 0.0
  %304 = vmatpush.msra.mxu0 0.0
  %305 = vmatpush.msra.mxu0 0.0
  %306 = vmatpush.msra.mxu0 0.0
  %307 = vmatpush.msra.mxu0 0.0
  %308 = vmatpush.msra.mxu0 0.0
  %309 = vmatpush.msra.mxu0 0.0
  %310 = vmatpush.msra.mxu0 0.0
  %311 = vmatpush.msra.mxu0 0.0
  %312 = vmatpush.msra.mxu0 %v212
  %313 = vmatpush.msra.mxu0 %v207
  %314 = vmatpush.msra.mxu0 %v202
  %315 = vmatpush.msra.mxu0 %v197
  %316 = vmatmul.f32.gmra.mxu0 %v231
  %v317 = vpop.f32.mrf.mxu0
  %v318 = vadd.f32 %v222, %v317
  %319 = vmatmul.f32.gmra.mxu0 %v234
  %v320 = vpop.f32.mrf.mxu0
  %v321 = vadd.f32 %v222, %v320
  %322 = vmatmul.f32.gmra.mxu0 %v237
  %v323 = vpop.f32.mrf.mxu0
  %v324 = vadd.f32 %v222, %v323
  %325 = vmatmul.f32.gmra.mxu0 %v240
  %v326 = vpop.f32.mrf.mxu0
  %v327 = vadd.f32 %v222, %v326
  %328 = vdwg.mxu0
  %329 = vmatpush.msra.mxu0 0.0
  %330 = vmatpush.msra.mxu0 0.0
  %331 = vmatpush.msra.mxu0 0.0
  %332 = vmatpush.msra.mxu0 0.0
  %333 = vmatpush.msra.mxu0 0.0
  %334 = vmatpush.msra.mxu0 0.0
  %335 = vmatpush.msra.mxu0 0.0
  %336 = vmatpush.msra.mxu0 0.0
  %337 = vmatpush.msra.mxu0 0.0
  %338 = vmatpush.msra.mxu0 0.0
  %339 = vmatpush.msra.mxu0 0.0
  %340 = vmatpush.msra.mxu0 0.0
  %341 = vmatpush.msra.mxu0 %v213
  %342 = vmatpush.msra.mxu0 %v208
  %343 = vmatpush.msra.mxu0 %v203
  %344 = vmatpush.msra.mxu0 %v198
  %345 = vmatmul.f32.gmra.mxu0 %v231
  %v346 = vpop.f32.mrf.mxu0
  %v347 = vadd.f32 %v223, %v346
  %348 = vmatmul.f32.gmra.mxu0 %v234
  %v349 = vpop.f32.mrf.mxu0
  %v350 = vadd.f32 %v223, %v349
  %351 = vmatmul.f32.gmra.mxu0 %v237
  %v352 = vpop.f32.mrf.mxu0
  %v353 = vadd.f32 %v223, %v352
  %354 = vmatmul.f32.gmra.mxu0 %v240
  %v355 = vpop.f32.mrf.mxu0
  %v356 = vadd.f32 %v223, %v355
  %357 = vdwg.mxu0
  %358 = vmatpush.msra.mxu0 0.0
  %359 = vmatpush.msra.mxu0 0.0
  %360 = vmatpush.msra.mxu0 0.0
  %361 = vmatpush.msra.mxu0 0.0
  %362 = vmatpush.msra.mxu0 0.0
  %363 = vmatpush.msra.mxu0 0.0
  %364 = vmatpush.msra.mxu0 0.0
  %365 = vmatpush.msra.mxu0 0.0
  %366 = vmatpush.msra.mxu0 0.0
  %367 = vmatpush.msra.mxu0 0.0
  %368 = vmatpush.msra.mxu0 0.0
  %369 = vmatpush.msra.mxu0 0.0
  %370 = vmatpush.msra.mxu0 %v214
  %371 = vmatpush.msra.mxu0 %v209
  %372 = vmatpush.msra.mxu0 %v204
  %373 = vmatpush.msra.mxu0 %v199
  %374 = vmatmul.f32.gmra.mxu0 %v231
  %v375 = vpop.f32.mrf.mxu0
  %v376 = vadd.f32 %v224, %v375
  %377 = vmatmul.f32.gmra.mxu0 %v234
  %v378 = vpop.f32.mrf.mxu0
  %v379 = vadd.f32 %v224, %v378
  %380 = vmatmul.f32.gmra.mxu0 %v237
  %v381 = vpop.f32.mrf.mxu0
  %v382 = vadd.f32 %v224, %v381
  %383 = vmatmul.f32.gmra.mxu0 %v240
  %v384 = vpop.f32.mrf.mxu0
  %v385 = vadd.f32 %v224, %v384
  %386 = vdwg.mxu0
  %v387 = vmax.f32 %v318, %v321
  %v388 = vrot.slane %v387, 4
  %v389 = vmax.f32 %v387, %v388
  %v390 = vrot.slane %v389, 2
  %v391 = vmax.f32 %v389, %v390
  %v392 = vrot.slane %v391, 1
  %v393 = vmax.f32 %v391, %v392
  %v394 = vmax.f32 %v347, %v350
  %v395 = vrot.slane %v394, 4
  %v396 = vmax.f32 %v394, %v395
  %v397 = vrot.slane %v396, 2
  %v398 = vmax.f32 %v396, %v397
  %v399 = vrot.slane %v398, 1
  %v400 = vmax.f32 %v398, %v399
  %v401 = vmax.f32 %v324, %v327
  %v402 = vrot.slane %v401, 4
  %v403 = vmax.f32 %v401, %v402
  %v404 = vrot.slane %v403, 2
  %v405 = vmax.f32 %v403, %v404
  %v406 = vrot.slane %v405, 1
  %v407 = vmax.f32 %v405, %v406
  %v408 = vmax.f32 %v353, %v356
  %v409 = vrot.slane %v408, 4
  %v410 = vmax.f32 %v408, %v409
  %v411 = vrot.slane %v410, 2
  %v412 = vmax.f32 %v410, %v411
  %v413 = vrot.slane %v412, 1
  %v414 = vmax.f32 %v412, %v413
  %v415 = vsub.f32 %v318, %v393
  %v416 = vsub.f32 %v347, %v400
  %v417 = vsub.f32 %v321, %v393
  %v418 = vsub.f32 %v350, %v400
  %v419 = vsub.f32 %v324, %v407
  %v420 = vsub.f32 %v353, %v414
  %v421 = vsub.f32 %v327, %v407
  %v422 = vsub.f32 %v356, %v414
  %v423 = vmul.f32 %v415, 1.442695
  %v424 = vpow.pop %v423
  %v425 = vmul.f32 %v416, 1.442695
  %v426 = vpow.pop %v425
  %v427 = vmul.f32 %v417, 1.442695
  %v428 = vpow.pop %v427
  %v429 = vmul.f32 %v418, 1.442695
  %v430 = vpow.pop %v429
  %v431 = vmul.f32 %v419, 1.442695
  %v432 = vpow.pop %v431
  %v433 = vmul.f32 %v420, 1.442695
  %v434 = vpow.pop %v433
  %v435 = vmul.f32 %v421, 1.442695
  %v436 = vpow.pop %v435
  %v437 = vmul.f32 %v422, 1.442695
  %v438 = vpow.pop %v437
  %v439 = vadd.f32 %v424, %v428
  %v440 = vrot.slane %v439, 4
  %v441 = vadd.f32 %v439, %v440
  %v442 = vrot.slane %v441, 2
  %v443 = vadd.f32 %v441, %v442
  %v444 = vrot.slane %v443, 1
  %v445 = vadd.f32 %v443, %v444
  %v446 = vadd.f32 %v426, %v430
  %v447 = vrot.slane %v446, 4
  %v448 = vadd.f32 %v446, %v447
  %v449 = vrot.slane %v448, 2
  %v450 = vadd.f32 %v448, %v449
  %v451 = vrot.slane %v450, 1
  %v452 = vadd.f32 %v450, %v451
  %v453 = vadd.f32 %v432, %v436
  %v454 = vrot.slane %v453, 4
  %v455 = vadd.f32 %v453, %v454
  %v456 = vrot.slane %v455, 2
  %v457 = vadd.f32 %v455, %v456
  %v458 = vrot.slane %v457, 1
  %v459 = vadd.f32 %v457, %v458
  %v460 = vadd.f32 %v434, %v438
  %v461 = vrot.slane %v460, 4
  %v462 = vadd.f32 %v460, %v461
  %v463 = vrot.slane %v462, 2
  %v464 = vadd.f32 %v462, %v463
  %v465 = vrot.slane %v464, 1
  %v466 = vadd.f32 %v464, %v465
  %v467 = vrcp.pop %v445
  %v468 = vmul.f32 %v445, %v467
  %v469 = vsub.f32 1.0, %v468
  %v470 = vmul.f32 %v467, %v469
  %v471 = vadd.f32 %v467, %v470
  %vm472 = vweird.f32 %v445
  %vm473 = vweird.f32 %v467
  %vm474 = vmor %vm472, %vm473
  %v475 = vsel %vm474, %v467, %v471
  %v476 = vand.u32 2147483647, %v445
  %vm477 = vcmp.eq.f32.partialorder %v476, 8.507059e+37
  %v478 = vand.u32 %v445, 2147483648
  %v479 = vor.u32 1.1754944e-38, %v478
  %v480 = vsel %vm477, %v479, %v475
  %v481 = vmul.f32 %v424, %v480
  %v482 = vrcp.pop %v452
  %v483 = vmul.f32 %v452, %v482
  %v484 = vsub.f32 1.0, %v483
  %v485 = vmul.f32 %v482, %v484
  %v486 = vadd.f32 %v482, %v485
  %vm487 = vweird.f32 %v452
  %vm488 = vweird.f32 %v482
  %vm489 = vmor %vm487, %vm488
  %v490 = vsel %vm489, %v482, %v486
  %v491 = vand.u32 2147483647, %v452
  %vm492 = vcmp.eq.f32.partialorder %v491, 8.507059e+37
  %v493 = vand.u32 %v452, 2147483648
  %v494 = vor.u32 1.1754944e-38, %v493
  %v495 = vsel %vm492, %v494, %v490
  %v496 = vmul.f32 %v426, %v495
  %v497 = vmul.f32 %v428, %v480
  %v498 = vmul.f32 %v430, %v495
  %v499 = vrcp.pop %v459
  %v500 = vmul.f32 %v459, %v499
  %v501 = vsub.f32 1.0, %v500
  %v502 = vmul.f32 %v499, %v501
  %v503 = vadd.f32 %v499, %v502
  %vm504 = vweird.f32 %v459
  %vm505 = vweird.f32 %v499
  %vm506 = vmor %vm504, %vm505
  %v507 = vsel %vm506, %v499, %v503
  %v508 = vand.u32 2147483647, %v459
  %vm509 = vcmp.eq.f32.partialorder %v508, 8.507059e+37
  %v510 = vand.u32 %v459, 2147483648
  %v511 = vor.u32 1.1754944e-38, %v510
  %v512 = vsel %vm509, %v511, %v507
  %v513 = vmul.f32 %v432, %v512
  %v514 = vrcp.pop %v466
  %v515 = vmul.f32 %v466, %v514
  %v516 = vsub.f32 1.0, %v515
  %v517 = vmul.f32 %v514, %v516
  %v518 = vadd.f32 %v514, %v517
  %vm519 = vweird.f32 %v466
  %vm520 = vweird.f32 %v514
  %vm521 = vmor %vm519, %vm520
  %v522 = vsel %vm521, %v514, %v518
  %v523 = vand.u32 2147483647, %v466
  %vm524 = vcmp.eq.f32.partialorder %v523, 8.507059e+37
  %v525 = vand.u32 %v466, 2147483648
  %v526 = vor.u32 1.1754944e-38, %v525
  %v527 = vsel %vm524, %v526, %v522
  %v528 = vmul.f32 %v434, %v527
  %v529 = vmul.f32 %v436, %v512
  %v530 = vmul.f32 %v438, %v527
  %v531 = vmul.f32 %v481, %v376
  %v532 = vmul.f32 %v497, %v379
  %v533 = vmul.f32 %v513, %v382
  %v534 = vmul.f32 %v529, %v385
  %v535 = vadd.f32 %v531, %v532
  %v536 = vrot.slane %v535, 4
  %v537 = vadd.f32 %v535, %v536
  %v538 = vrot.slane %v537, 2
  %v539 = vadd.f32 %v537, %v538
  %v540 = vrot.slane %v539, 1
  %v541 = vadd.f32 %v539, %v540
  %v542 = vadd.f32 %v533, %v534
  %v543 = vrot.slane %v542, 4
  %v544 = vadd.f32 %v542, %v543
  %v545 = vrot.slane %v544, 2
  %v546 = vadd.f32 %v544, %v545
  %v547 = vrot.slane %v546, 1
  %v548 = vadd.f32 %v546, %v547
  %v549 = vmul.f32 %v260, %v541
  %v550 = vmul.f32 %v263, %v541
  %v551 = vmul.f32 %v266, %v548
  %v552 = vmul.f32 %v269, %v548
  %v553 = vmul.f32 %v496, %v549
  %v554 = vmul.f32 %v498, %v550
  %v555 = vmul.f32 %v528, %v551
  %v556 = vmul.f32 %v530, %v552
  %v557 = vadd.f32 %v553, %v554
  %v558 = vrot.slane %v557, 4
  %v559 = vadd.f32 %v557, %v558
  %v560 = vrot.slane %v559, 2
  %v561 = vadd.f32 %v559, %v560
  %v562 = vrot.slane %v561, 1
  %v563 = vadd.f32 %v561, %v562
  %v564 = vadd.f32 %v555, %v556
  %v565 = vrot.slane %v564, 4
  %v566 = vadd.f32 %v564, %v565
  %v567 = vrot.slane %v566, 2
  %v568 = vadd.f32 %v566, %v567
  %v569 = vrot.slane %v568, 1
  %v570 = vadd.f32 %v568, %v569
  %v571 = vmul.f32 %v289, %v563
  %v572 = vmul.f32 %v292, %v563
  %v573 = vmul.f32 %v295, %v570
  %v574 = vmul.f32 %v298, %v570
  %v575 = vld [vmem:[%s4] sm:$0xff]
  %v576 = vld [vmem:[%s4 + $0x8] sm:$0xff]
  %v577 = vld [vmem:[%s4 + $0x10] sm:$0xff]
  %v578 = vld [vmem:[%s4 + $0x18] sm:$0xff]
  %v579 = vld [vmem:[%s4 + $0x20] sm:$0xff]
  %v580 = vld [vmem:[%s4 + $0x28] sm:$0xff]
  %v581 = vld [vmem:[%s4 + $0x30] sm:$0xff]
  %v582 = vld [vmem:[%s4 + $0x38] sm:$0xff]
  %v583 = vld [vmem:[%s4 + $0x40] sm:$0xff]
  %v584 = vld [vmem:[%s4 + $0x48] sm:$0xff]
  %v585 = vld [vmem:[%s4 + $0x50] sm:$0xff]
  %v586 = vld [vmem:[%s4 + $0x58] sm:$0xff]
  %v587 = vld [vmem:[%s4 + $0x60] sm:$0xff]
  %v588 = vld [vmem:[%s4 + $0x68] sm:$0xff]
  %v589 = vld [vmem:[%s4 + $0x70] sm:$0xff]
  %v590 = vld [vmem:[%s4 + $0x78] sm:$0xff]
  %v591 = vld [vmem:[%s4 + $0x80] sm:$0x1]
  %v592 = vperm.slane %v591, 0
  %593 = vmatpush.msra.mxu0 %v590
  %594 = vmatpush.msra.mxu0 %v589
  %595 = vmatpush.msra.mxu0 %v588
  %596 = vmatpush.msra.mxu0 %v587
  %597 = vmatpush.msra.mxu0 %v586
  %598 = vmatpush.msra.mxu0 %v585
  %599 = vmatpush.msra.mxu0 %v584
  %600 = vmatpush.msra.mxu0 %v583
  %601 = vmatpush.msra.mxu0 %v582
  %602 = vmatpush.msra.mxu0 %v581
  %603 = vmatpush.msra.mxu0 %v580
  %604 = vmatpush.msra.mxu0 %v579
  %605 = vmatpush.msra.mxu0 %v578
  %606 = vmatpush.msra.mxu0 %v577
  %607 = vmatpush.msra.mxu0 %v576
  %608 = vmatpush.msra.mxu0 %v575
  %609 = vmatmul.f32.gmra.mxu0 %v571
  %v610 = vpop.f32.mrf.mxu0
  %v611 = vadd.f32 %v592, %v610
  %612 = vmatmul.f32.gmra.mxu0 %v572
  %v613 = vpop.f32.mrf.mxu0
  %v614 = vadd.f32 %v592, %v613
  %615 = vmatmul.f32.gmra.mxu0 %v573
  %v616 = vpop.f32.mrf.mxu0
  %v617 = vadd.f32 %v592, %v616
  %618 = vmatmul.f32.gmra.mxu0 %v574
  %v619 = vpop.f32.mrf.mxu0
  %v620 = vadd.f32 %v592, %v619
  %621 = vdwg.mxu0
  %s622 = scalar_lea.vmem %s1, 160
  %v623 = vld [vmem:[%s622] sm:$0xff]
  %v624 = vld [vmem:[%s622 + $0x8] sm:$0xff]
  %v625 = vld [vmem:[%s622 + $0x10] sm:$0xff]
  %v626 = vld [vmem:[%s622 + $0x18] sm:$0xff]
  %v627 = vmul.f32 %v611, %v623
  %v628 = vmul.f32 %v614, %v624
  %v629 = vmul.f32 %v617, %v625
  %v630 = vmul.f32 %v620, %v626
  %v631 = vadd.f32 %v70, %v627
  %v632 = vadd.f32 %v73, %v628
  %v633 = vadd.f32 %v76, %v629
  %v634 = vadd.f32 %v79, %v630
  %s635 = scalar_lea.vmem %s1, 96
  %v636 = vld [vmem:[%s635] sm:$0xff]
  %v637 = vld [vmem:[%s635 + $0x8] sm:$0xff]
  %v638 = vld [vmem:[%s635 + $0x10] sm:$0xff]
  %v639 = vld [vmem:[%s635 + $0x18] sm:$0xff]
  %s640 = scalar_lea.vmem %s1, 128
  %v641 = vld [vmem:[%s640] sm:$0xff]
  %v642 = vld [vmem:[%s640 + $0x8] sm:$0xff]
  %v643 = vld [vmem:[%s640 + $0x10] sm:$0xff]
  %v644 = vld [vmem:[%s640 + $0x18] sm:$0xff]
  %v645 = vsel %vm91, %v631, 0.0
  %646 = vadd.xlane.f32.xlu0 %v645
  %v647 = vpop.xlane.xlu0 %646
  %v648 = vsel %vm91, %v632, 0.0
  %649 = vadd.xlane.f32.xlu0 %v648
  %v650 = vpop.xlane.xlu0 %649
  %v651 = vsel %vm91, %v633, 0.0
  %652 = vadd.xlane.f32.xlu0 %v651
  %v653 = vpop.xlane.xlu0 %652
  %v654 = vsel %vm91, %v634, 0.0
  %655 = vadd.xlane.f32.xlu0 %v654
  %v656 = vpop.xlane.xlu0 %655
  %v657 = vmul.f32 %v647, %v110
  %v658 = vmul.f32 %v650, %v110
  %v659 = vmul.f32 %v653, %v110
  %v660 = vmul.f32 %v656, %v110
  %v661 = vsub.f32 %v631, %v657
  %v662 = vsub.f32 %v632, %v658
  %v663 = vsub.f32 %v633, %v659
  %v664 = vsub.f32 %v634, %v660
  %v665 = vmul.f32 %v661, %v661
  %v666 = vmul.f32 %v662, %v662
  %v667 = vmul.f32 %v663, %v663
  %v668 = vmul.f32 %v664, %v664
  %v669 = vsel %vm91, %v665, 0.0
  %670 = vadd.xlane.f32.xlu0 %v669
  %v671 = vpop.xlane.xlu0 %670
  %v672 = vsel %vm91, %v666, 0.0
  %673 = vadd.xlane.f32.xlu0 %v672
  %v674 = vpop.xlane.xlu0 %673
  %v675 = vsel %vm91, %v667, 0.0
  %676 = vadd.xlane.f32.xlu0 %v675
  %v677 = vpop.xlane.xlu0 %676
  %v678 = vsel %vm91, %v668, 0.0
  %679 = vadd.xlane.f32.xlu0 %v678
  %v680 = vpop.xlane.xlu0 %679
  %v681 = vmul.f32 %v671, %v110
  %v682 = vmul.f32 %v674, %v110
  %v683 = vmul.f32 %v677, %v110
  %v684 = vmul.f32 %v680, %v110
  %v685 = vadd.f32 %v681, 1e-06
  %v686 = vadd.f32 %v682, 1e-06
  %v687 = vadd.f32 %v683, 1e-06
  %v688 = vadd.f32 %v684, 1e-06
  %v689 = vrsqrt.pop %v685
  %v690 = vmul.f32 %v689, %v685
  %v691 = vmul.f32 %v690, %v689
  %v692 = vmul.f32 0.5, %v691
  %v693 = vsub.f32 1.5, %v692
  %v694 = vmul.f32 %v689, %v693
  %vm695 = vweird.f32 %v685
  %vm696 = vweird.f32 %v689
  %vm697 = vmor %vm695, %vm696
  %v698 = vsel %vm697, %v689, %v694
  %v699 = vrsqrt.pop %v686
  %v700 = vmul.f32 %v699, %v686
  %v701 = vmul.f32 %v700, %v699
  %v702 = vmul.f32 0.5, %v701
  %v703 = vsub.f32 1.5, %v702
  %v704 = vmul.f32 %v699, %v703
  %vm705 = vweird.f32 %v686
  %vm706 = vweird.f32 %v699
  %vm707 = vmor %vm705, %vm706
  %v708 = vsel %vm707, %v699, %v704
  %v709 = vrsqrt.pop %v687
  %v710 = vmul.f32 %v709, %v687
  %v711 = vmul.f32 %v710, %v709
  %v712 = vmul.f32 0.5, %v711
  %v713 = vsub.f32 1.5, %v712
  %v714 = vmul.f32 %v709, %v713
  %vm715 = vweird.f32 %v687
  %vm716 = vweird.f32 %v709
  %vm717 = vmor %vm715, %vm716
  %v718 = vsel %vm717, %v709, %v714
  %v719 = vrsqrt.pop %v688
  %v720 = vmul.f32 %v719, %v688
  %v721 = vmul.f32 %v720, %v719
  %v722 = vmul.f32 0.5, %v721
  %v723 = vsub.f32 1.5, %v722
  %v724 = vmul.f32 %v719, %v723
  %vm725 = vweird.f32 %v688
  %vm726 = vweird.f32 %v719
  %vm727 = vmor %vm725, %vm726
  %v728 = vsel %vm727, %v719, %v724
  %v729 = vmul.f32 %v698, %v636
  %v730 = vmul.f32 %v708, %v637
  %v731 = vmul.f32 %v718, %v638
  %v732 = vmul.f32 %v728, %v639
  %v733 = vmul.f32 %v661, %v729
  %v734 = vmul.f32 %v662, %v730
  %v735 = vmul.f32 %v663, %v731
  %v736 = vmul.f32 %v664, %v732
  %v737 = vadd.f32 %v733, %v641
  %v738 = vadd.f32 %v734, %v642
  %v739 = vadd.f32 %v735, %v643
  %v740 = vadd.f32 %v736, %v644
  %v741 = vld [vmem:[%s3 + $0x28] sm:$0xff]
  %v742 = vld [vmem:[%s3 + $0x58] sm:$0xff]
  %v743 = vld [vmem:[%s3 + $0x88] sm:$0xff]
  %v744 = vld [vmem:[%s3 + $0xb8] sm:$0xff]
  %v745 = vld [vmem:[%s3 + $0xe8] ss:$0 sm:$0xff]
  %v747 = vsel %vm91, %v737, 0
  %v750 = vsel %vm91, %v738, 0
  %v753 = vsel %vm91, %v739, 0
  %v756 = vsel %vm91, %v740, 0
  %758 = vmatpush.msra.mxu0 0.0
  %759 = vmatpush.msra.mxu0 0.0
  %760 = vmatpush.msra.mxu0 0.0
  %761 = vmatpush.msra.mxu0 0.0
  %762 = vmatpush.msra.mxu0 0.0
  %763 = vmatpush.msra.mxu0 0.0
  %764 = vmatpush.msra.mxu0 0.0
  %765 = vmatpush.msra.mxu0 0.0
  %766 = vmatpush.msra.mxu0 0.0
  %767 = vmatpush.msra.mxu0 0.0
  %768 = vmatpush.msra.mxu0 0.0
  %769 = vmatpush.msra.mxu0 0.0
  %770 = vmatpush.msra.mxu0 %v744
  %771 = vmatpush.msra.mxu0 %v743
  %772 = vmatpush.msra.mxu0 %v742
  %773 = vmatpush.msra.mxu0 %v741
  %774 = vmatmul.f32.gmra.mxu0 %v747
  %v775 = vpop.f32.mrf.mxu0
  %v776 = vadd.f32 %v745, %v775
  %777 = vmatmul.f32.gmra.mxu0 %v750
  %v778 = vpop.f32.mrf.mxu0
  %v779 = vadd.f32 %v745, %v778
  %780 = vmatmul.f32.gmra.mxu0 %v753
  %v781 = vpop.f32.mrf.mxu0
  %v782 = vadd.f32 %v745, %v781
  %783 = vmatmul.f32.gmra.mxu0 %v756
  %v784 = vpop.f32.mrf.mxu0
  %v785 = vadd.f32 %v745, %v784
  %786 = vdwg.mxu0
  %v787 = vmul.f32 %v776, 0.5
  %v788 = vmul.f32 %v779, 0.5
  %v789 = vmul.f32 %v782, 0.5
  %v790 = vmul.f32 %v785, 0.5
  %v791 = vmul.f32 %v776, 0.044715
  %v792 = vmul.f32 %v779, 0.044715
  %v793 = vmul.f32 %v782, 0.044715
  %v794 = vmul.f32 %v785, 0.044715
  %v795 = vmul.f32 %v791, %v776
  %v796 = vmul.f32 %v792, %v779
  %v797 = vmul.f32 %v793, %v782
  %v798 = vmul.f32 %v794, %v785
  %v799 = vmul.f32 %v795, %v776
  %v800 = vmul.f32 %v796, %v779
  %v801 = vmul.f32 %v797, %v782
  %v802 = vmul.f32 %v798, %v785
  %v803 = vadd.f32 %v776, %v799
  %v804 = vadd.f32 %v779, %v800
  %v805 = vadd.f32 %v782, %v801
  %v806 = vadd.f32 %v785, %v802
  %v807 = vmul.f32 %v803, 0.7978846
  %v808 = vmul.f32 %v804, 0.7978846
  %v809 = vmul.f32 %v805, 0.7978846
  %v810 = vmul.f32 %v806, 0.7978846
  %v811 = vtanh.pop %v807
  %v812 = vtanh.pop %v808
  %v813 = vtanh.pop %v809
  %v814 = vtanh.pop %v810
  %v815 = vadd.f32 %v811, 1.0
  %v816 = vadd.f32 %v812, 1.0
  %v817 = vadd.f32 %v813, 1.0
  %v818 = vadd.f32 %v814, 1.0
  %v819 = vmul.f32 %v787, %v815
  %v820 = vmul.f32 %v788, %v816
  %v821 = vmul.f32 %v789, %v817
  %v822 = vmul.f32 %v790, %v818
  %s823 = scalar_lea.vmem %s4, 136
  %v824 = vld [vmem:[%s823] sm:$0xff]
  %v825 = vld [vmem:[%s823 + $0x8] sm:$0xff]
  %v826 = vld [vmem:[%s823 + $0x10] sm:$0xff]
  %v827 = vld [vmem:[%s823 + $0x18] sm:$0xff]
  %v828 = vld [vmem:[%s823 + $0x20] sm:$0xff]
  %v829 = vld [vmem:[%s823 + $0x28] sm:$0xff]
  %v830 = vld [vmem:[%s823 + $0x30] sm:$0xff]
  %v831 = vld [vmem:[%s823 + $0x38] sm:$0xff]
  %v832 = vld [vmem:[%s823 + $0x40] sm:$0xff]
  %v833 = vld [vmem:[%s823 + $0x48] sm:$0xff]
  %v834 = vld [vmem:[%s823 + $0x50] sm:$0xff]
  %v835 = vld [vmem:[%s823 + $0x58] sm:$0xff]
  %v836 = vld [vmem:[%s823 + $0x60] sm:$0xff]
  %v837 = vld [vmem:[%s823 + $0x68] sm:$0xff]
  %v838 = vld [vmem:[%s823 + $0x70] sm:$0xff]
  %v839 = vld [vmem:[%s823 + $0x78] sm:$0xff]
  %v840 = vld [vmem:[%s823 + $0x80] sm:$0x1]
  %v841 = vperm.slane %v840, 0
  %842 = vmatpush.msra.mxu0 %v839
  %843 = vmatpush.msra.mxu0 %v838
  %844 = vmatpush.msra.mxu0 %v837
  %845 = vmatpush.msra.mxu0 %v836
  %846 = vmatpush.msra.mxu0 %v835
  %847 = vmatpush.msra.mxu0 %v834
  %848 = vmatpush.msra.mxu0 %v833
  %849 = vmatpush.msra.mxu0 %v832
  %850 = vmatpush.msra.mxu0 %v831
  %851 = vmatpush.msra.mxu0 %v830
  %852 = vmatpush.msra.mxu0 %v829
  %853 = vmatpush.msra.mxu0 %v828
  %854 = vmatpush.msra.mxu0 %v827
  %855 = vmatpush.msra.mxu0 %v826
  %856 = vmatpush.msra.mxu0 %v825
  %857 = vmatpush.msra.mxu0 %v824
  %858 = vmatmul.f32.gmra.mxu0 %v819
  %v859 = vpop.f32.mrf.mxu0
  %v860 = vadd.f32 %v841, %v859
  %861 = vmatmul.f32.gmra.mxu0 %v820
  %v862 = vpop.f32.mrf.mxu0
  %v863 = vadd.f32 %v841, %v862
  %864 = vmatmul.f32.gmra.mxu0 %v821
  %v865 = vpop.f32.mrf.mxu0
  %v866 = vadd.f32 %v841, %v865
  %867 = vmatmul.f32.gmra.mxu0 %v822
  %v868 = vpop.f32.mrf.mxu0
  %v869 = vadd.f32 %v841, %v868
  %870 = vdwg.mxu0
  %s871 = scalar_lea.vmem %s1, 192
  %v872 = vld [vmem:[%s871] sm:$0xff]
  %v873 = vld [vmem:[%s871 + $0x8] sm:$0xff]
  %v874 = vld [vmem:[%s871 + $0x10] sm:$0xff]
  %v875 = vld [vmem:[%s871 + $0x18] sm:$0xff]
  %v876 = vmul.f32 %v860, %v872
  %v877 = vmul.f32 %v863, %v873
  %v878 = vmul.f32 %v866, %v874
  %v879 = vmul.f32 %v869, %v875
  %v880 = vadd.f32 %v631, %v876
  %v881 = vadd.f32 %v632, %v877
  %v882 = vadd.f32 %v633, %v878
  %v883 = vadd.f32 %v634, %v879
  %s884 = scalar_lea.vmem %s1, 224
  %v885 = vld [vmem:[%s884] sm:$0xff]
  %v886 = vld [vmem:[%s884 + $0x8] sm:$0xff]
  %v887 = vld [vmem:[%s884 + $0x10] sm:$0xff]
  %v888 = vld [vmem:[%s884 + $0x18] sm:$0xff]
  %s889 = scalar_lea.vmem %s1, 256
  %v890 = vld [vmem:[%s889] sm:$0xff]
  %v891 = vld [vmem:[%s889 + $0x8] sm:$0xff]
  %v892 = vld [vmem:[%s889 + $0x10] sm:$0xff]
  %v893 = vld [vmem:[%s889 + $0x18] sm:$0xff]
  %v894 = vsel %vm91, %v880, 0.0
  %895 = vadd.xlane.f32.xlu0 %v894
  %v896 = vpop.xlane.xlu0 %895
  %v897 = vsel %vm91, %v881, 0.0
  %898 = vadd.xlane.f32.xlu0 %v897
  %v899 = vpop.xlane.xlu0 %898
  %v900 = vsel %vm91, %v882, 0.0
  %901 = vadd.xlane.f32.xlu0 %v900
  %v902 = vpop.xlane.xlu0 %901
  %v903 = vsel %vm91, %v883, 0.0
  %904 = vadd.xlane.f32.xlu0 %v903
  %v905 = vpop.xlane.xlu0 %904
  %v906 = vmul.f32 %v896, %v110
  %v907 = vmul.f32 %v899, %v110
  %v908 = vmul.f32 %v902, %v110
  %v909 = vmul.f32 %v905, %v110
  %v910 = vsub.f32 %v880, %v906
  %v911 = vsub.f32 %v881, %v907
  %v912 = vsub.f32 %v882, %v908
  %v913 = vsub.f32 %v883, %v909
  %v914 = vmul.f32 %v910, %v910
  %v915 = vmul.f32 %v911, %v911
  %v916 = vmul.f32 %v912, %v912
  %v917 = vmul.f32 %v913, %v913
  %v918 = vsel %vm91, %v914, 0.0
  %919 = vadd.xlane.f32.xlu0 %v918
  %v920 = vpop.xlane.xlu0 %919
  %v921 = vsel %vm91, %v915, 0.0
  %922 = vadd.xlane.f32.xlu0 %v921
  %v923 = vpop.xlane.xlu0 %922
  %v924 = vsel %vm91, %v916, 0.0
  %925 = vadd.xlane.f32.xlu0 %v924
  %v926 = vpop.xlane.xlu0 %925
  %v927 = vsel %vm91, %v917, 0.0
  %928 = vadd.xlane.f32.xlu0 %v927
  %v929 = vpop.xlane.xlu0 %928
  %v930 = vmul.f32 %v920, %v110
  %v931 = vmul.f32 %v923, %v110
  %v932 = vmul.f32 %v926, %v110
  %v933 = vmul.f32 %v929, %v110
  %v934 = vadd.f32 %v930, 1e-06
  %v935 = vadd.f32 %v931, 1e-06
  %v936 = vadd.f32 %v932, 1e-06
  %v937 = vadd.f32 %v933, 1e-06
  %v938 = vrsqrt.pop %v934
  %v939 = vmul.f32 %v938, %v934
  %v940 = vmul.f32 %v939, %v938
  %v941 = vmul.f32 0.5, %v940
  %v942 = vsub.f32 1.5, %v941
  %v943 = vmul.f32 %v938, %v942
  %vm944 = vweird.f32 %v934
  %vm945 = vweird.f32 %v938
  %vm946 = vmor %vm944, %vm945
  %v947 = vsel %vm946, %v938, %v943
  %v948 = vrsqrt.pop %v935
  %v949 = vmul.f32 %v948, %v935
  %v950 = vmul.f32 %v949, %v948
  %v951 = vmul.f32 0.5, %v950
  %v952 = vsub.f32 1.5, %v951
  %v953 = vmul.f32 %v948, %v952
  %vm954 = vweird.f32 %v935
  %vm955 = vweird.f32 %v948
  %vm956 = vmor %vm954, %vm955
  %v957 = vsel %vm956, %v948, %v953
  %v958 = vrsqrt.pop %v936
  %v959 = vmul.f32 %v958, %v936
  %v960 = vmul.f32 %v959, %v958
  %v961 = vmul.f32 0.5, %v960
  %v962 = vsub.f32 1.5, %v961
  %v963 = vmul.f32 %v958, %v962
  %vm964 = vweird.f32 %v936
  %vm965 = vweird.f32 %v958
  %vm966 = vmor %vm964, %vm965
  %v967 = vsel %vm966, %v958, %v963
  %v968 = vrsqrt.pop %v937
  %v969 = vmul.f32 %v968, %v937
  %v970 = vmul.f32 %v969, %v968
  %v971 = vmul.f32 0.5, %v970
  %v972 = vsub.f32 1.5, %v971
  %v973 = vmul.f32 %v968, %v972
  %vm974 = vweird.f32 %v937
  %vm975 = vweird.f32 %v968
  %vm976 = vmor %vm974, %vm975
  %v977 = vsel %vm976, %v968, %v973
  %v978 = vmul.f32 %v947, %v885
  %v979 = vmul.f32 %v957, %v886
  %v980 = vmul.f32 %v967, %v887
  %v981 = vmul.f32 %v977, %v888
  %v982 = vmul.f32 %v910, %v978
  %v983 = vmul.f32 %v911, %v979
  %v984 = vmul.f32 %v912, %v980
  %v985 = vmul.f32 %v913, %v981
  %v986 = vadd.f32 %v982, %v890
  %v987 = vadd.f32 %v983, %v891
  %v988 = vadd.f32 %v984, %v892
  %v989 = vadd.f32 %v985, %v893
  %s990 = scalar_lea.vmem %s3, 240
  %v991 = vld [vmem:[%s990] sm:$0xff]
  %v992 = vld [vmem:[%s990 + $0x8] sm:$0xff]
  %v993 = vld [vmem:[%s990 + $0x10] sm:$0xff]
  %v994 = vld [vmem:[%s990 + $0x18] sm:$0xff]
  %v995 = vld [vmem:[%s990 + $0x20] sm:$0xff]
  %v996 = vld [vmem:[%s990 + $0x30] sm:$0xff]
  %v997 = vld [vmem:[%s990 + $0x38] sm:$0xff]
  %v998 = vld [vmem:[%s990 + $0x40] sm:$0xff]
  %v999 = vld [vmem:[%s990 + $0x48] sm:$0xff]
  %v1000 = vld [vmem:[%s990 + $0x50] sm:$0xff]
  %v1001 = vld [vmem:[%s990 + $0x60] sm:$0xff]
  %v1002 = vld [vmem:[%s990 + $0x68] sm:$0xff]
  %v1003 = vld [vmem:[%s990 + $0x70] sm:$0xff]
  %v1004 = vld [vmem:[%s990 + $0x78] sm:$0xff]
  %v1005 = vld [vmem:[%s990 + $0x80] sm:$0xff]
  %v1006 = vld [vmem:[%s990 + $0x90] sm:$0xff]
  %v1007 = vld [vmem:[%s990 + $0x98] sm:$0xff]
  %v1008 = vld [vmem:[%s990 + $0xa0] sm:$0xff]
  %v1009 = vld [vmem:[%s990 + $0xa8] sm:$0xff]
  %v1010 = vld [vmem:[%s990 + $0xb0] sm:$0xff]
  %s1011 = scalar_lea.vmem %s990, 192
  %v1012 = vld [vmem:[%s1011] ss:$8 sm:$0xf]
  %v1013 = vld [vmem:[%s1011] ss:$8 sm:$0x10]
  %v1014 = vor.u32 %v1012, %v1013
  %v1016 = vperm.slane %v1014, 0
  %v1017 = vperm.slane %v1014, 1
  %v1018 = vperm.slane %v1014, 2
  %v1019 = vperm.slane %v1014, 3
  %v1020 = vperm.slane %v1014, 4
  %v1027 = vsel %vm91, %v986, 0
  %v1030 = vsel %vm91, %v987, 0
  %v1033 = vsel %vm91, %v988, 0
  %v1036 = vsel %vm91, %v989, 0
  %1038 = vmatpush.msra.mxu0 0.0
  %1039 = vmatpush.msra.mxu0 0.0
  %1040 = vmatpush.msra.mxu0 0.0
  %1041 = vmatpush.msra.mxu0 0.0
  %1042 = vmatpush.msra.mxu0 0.0
  %1043 = vmatpush.msra.mxu0 0.0
  %1044 = vmatpush.msra.mxu0 0.0
  %1045 = vmatpush.msra.mxu0 0.0
  %1046 = vmatpush.msra.mxu0 0.0
  %1047 = vmatpush.msra.mxu0 0.0
  %1048 = vmatpush.msra.mxu0 0.0
  %1049 = vmatpush.msra.mxu0 0.0
  %1050 = vmatpush.msra.mxu0 %v1006
  %1051 = vmatpush.msra.mxu0 %v1001
  %1052 = vmatpush.msra.mxu0 %v996
  %1053 = vmatpush.msra.mxu0 %v991
  %1054 = vmatmul.f32.gmra.mxu0 %v1027
  %v1055 = vpop.f32.mrf.mxu0
  %v1056 = vadd.f32 %v1016, %v1055
  %1057 = vmatmul.f32.gmra.mxu0 %v1030
  %v1058 = vpop.f32.mrf.mxu0
  %v1059 = vadd.f32 %v1016, %v1058
  %1060 = vmatmul.f32.gmra.mxu0 %v1033
  %v1061 = vpop.f32.mrf.mxu0
  %v1062 = vadd.f32 %v1016, %v1061
  %1063 = vmatmul.f32.gmra.mxu0 %v1036
  %v1064 = vpop.f32.mrf.mxu0
  %v1065 = vadd.f32 %v1016, %v1064
  %1066 = vdwg.mxu0
  %1067 = vmatpush.msra.mxu0 0.0
  %1068 = vmatpush.msra.mxu0 0.0
  %1069 = vmatpush.msra.mxu0 0.0
  %1070 = vmatpush.msra.mxu0 0.0
  %1071 = vmatpush.msra.mxu0 0.0
  %1072 = vmatpush.msra.mxu0 0.0
  %1073 = vmatpush.msra.mxu0 0.0
  %1074 = vmatpush.msra.mxu0 0.0
  %1075 = vmatpush.msra.mxu0 0.0
  %1076 = vmatpush.msra.mxu0 0.0
  %1077 = vmatpush.msra.mxu0 0.0
  %1078 = vmatpush.msra.mxu0 0.0
  %1079 = vmatpush.msra.mxu0 %v1007
  %1080 = vmatpush.msra.mxu0 %v1002
  %1081 = vmatpush.msra.mxu0 %v997
  %1082 = vmatpush.msra.mxu0 %v992
  %1083 = vmatmul.f32.gmra.mxu0 %v1027
  %v1084 = vpop.f32.mrf.mxu0
  %v1085 = vadd.f32 %v1017, %v1084
  %1086 = vmatmul.f32.gmra.mxu0 %v1030
  %v1087 = vpop.f32.mrf.mxu0
  %v1088 = vadd.f32 %v1017, %v1087
  %1089 = vmatmul.f32.gmra.mxu0 %v1033
  %v1090 = vpop.f32.mrf.mxu0
  %v1091 = vadd.f32 %v1017, %v1090
  %1092 = vmatmul.f32.gmra.mxu0 %v1036
  %v1093 = vpop.f32.mrf.mxu0
  %v1094 = vadd.f32 %v1017, %v1093
  %1095 = vdwg.mxu0
  %1096 = vmatpush.msra.mxu0 0.0
  %1097 = vmatpush.msra.mxu0 0.0
  %1098 = vmatpush.msra.mxu0 0.0
  %1099 = vmatpush.msra.mxu0 0.0
  %1100 = vmatpush.msra.mxu0 0.0
  %1101 = vmatpush.msra.mxu0 0.0
  %1102 = vmatpush.msra.mxu0 0.0
  %1103 = vmatpush.msra.mxu0 0.0
  %1104 = vmatpush.msra.mxu0 0.0
  %1105 = vmatpush.msra.mxu0 0.0
  %1106 = vmatpush.msra.mxu0 0.0
  %1107 = vmatpush.msra.mxu0 0.0
  %1108 = vmatpush.msra.mxu0 %v1008
  %1109 = vmatpush.msra.mxu0 %v1003
  %1110 = vmatpush.msra.mxu0 %v998
  %1111 = vmatpush.msra.mxu0 %v993
  %1112 = vmatmul.f32.gmra.mxu0 %v1027
  %v1113 = vpop.f32.mrf.mxu0
  %v1114 = vadd.f32 %v1018, %v1113
  %1115 = vmatmul.f32.gmra.mxu0 %v1030
  %v1116 = vpop.f32.mrf.mxu0
  %v1117 = vadd.f32 %v1018, %v1116
  %1118 = vmatmul.f32.gmra.mxu0 %v1033
  %v1119 = vpop.f32.mrf.mxu0
  %v1120 = vadd.f32 %v1018, %v1119
  %1121 = vmatmul.f32.gmra.mxu0 %v1036
  %v1122 = vpop.f32.mrf.mxu0
  %v1123 = vadd.f32 %v1018, %v1122
  %1124 = vdwg.mxu0
  %1125 = vmatpush.msra.mxu0 0.0
  %1126 = vmatpush.msra.mxu0 0.0
  %1127 = vmatpush.msra.mxu0 0.0
  %1128 = vmatpush.msra.mxu0 0.0
  %1129 = vmatpush.msra.mxu0 0.0
  %1130 = vmatpush.msra.mxu0 0.0
  %1131 = vmatpush.msra.mxu0 0.0
  %1132 = vmatpush.msra.mxu0 0.0
  %1133 = vmatpush.msra.mxu0 0.0
  %1134 = vmatpush.msra.mxu0 0.0
  %1135 = vmatpush.msra.mxu0 0.0
  %1136 = vmatpush.msra.mxu0 0.0
  %1137 = vmatpush.msra.mxu0 %v1009
  %1138 = vmatpush.msra.mxu0 %v1004
  %1139 = vmatpush.msra.mxu0 %v999
  %1140 = vmatpush.msra.mxu0 %v994
  %1141 = vmatmul.f32.gmra.mxu0 %v1027
  %v1142 = vpop.f32.mrf.mxu0
  %v1143 = vadd.f32 %v1019, %v1142
  %1144 = vmatmul.f32.gmra.mxu0 %v1030
  %v1145 = vpop.f32.mrf.mxu0
  %v1146 = vadd.f32 %v1019, %v1145
  %1147 = vmatmul.f32.gmra.mxu0 %v1033
  %v1148 = vpop.f32.mrf.mxu0
  %v1149 = vadd.f32 %v1019, %v1148
  %1150 = vmatmul.f32.gmra.mxu0 %v1036
  %v1151 = vpop.f32.mrf.mxu0
  %v1152 = vadd.f32 %v1019, %v1151
  %1153 = vdwg.mxu0
  %1154 = vmatpush.msra.mxu0 0.0
  %1155 = vmatpush.msra.mxu0 0.0
  %1156 = vmatpush.msra.mxu0 0.0
  %1157 = vmatpush.msra.mxu0 0.0
  %1158 = vmatpush.msra.mxu0 0.0
  %1159 = vmatpush.msra.mxu0 0.0
  %1160 = vmatpush.msra.mxu0 0.0
  %1161 = vmatpush.msra.mxu0 0.0
  %1162 = vmatpush.msra.mxu0 0.0
  %1163 = vmatpush.msra.mxu0 0.0
  %1164 = vmatpush.msra.mxu0 0.0
  %1165 = vmatpush.msra.mxu0 0.0
  %1166 = vmatpush.msra.mxu0 %v1010
  %1167 = vmatpush.msra.mxu0 %v1005
  %1168 = vmatpush.msra.mxu0 %v1000
  %1169 = vmatpush.msra.mxu0 %v995
  %1170 = vmatmul.f32.gmra.mxu0 %v1027
  %v1171 = vpop.f32.mrf.mxu0
  %v1172 = vadd.f32 %v1020, %v1171
  %1173 = vmatmul.f32.gmra.mxu0 %v1030
  %v1174 = vpop.f32.mrf.mxu0
  %v1175 = vadd.f32 %v1020, %v1174
  %1176 = vmatmul.f32.gmra.mxu0 %v1033
  %v1177 = vpop.f32.mrf.mxu0
  %v1178 = vadd.f32 %v1020, %v1177
  %1179 = vmatmul.f32.gmra.mxu0 %v1036
  %v1180 = vpop.f32.mrf.mxu0
  %v1181 = vadd.f32 %v1020, %v1180
  %1182 = vdwg.mxu0
  %v1183 = vmax.f32 %v1114, %v1117
  %v1184 = vrot.slane %v1183, 4
  %v1185 = vmax.f32 %v1183, %v1184
  %v1186 = vrot.slane %v1185, 2
  %v1187 = vmax.f32 %v1185, %v1186
  %v1188 = vrot.slane %v1187, 1
  %v1189 = vmax.f32 %v1187, %v1188
  %v1190 = vmax.f32 %v1143, %v1146
  %v1191 = vrot.slane %v1190, 4
  %v1192 = vmax.f32 %v1190, %v1191
  %v1193 = vrot.slane %v1192, 2
  %v1194 = vmax.f32 %v1192, %v1193
  %v1195 = vrot.slane %v1194, 1
  %v1196 = vmax.f32 %v1194, %v1195
  %v1197 = vmax.f32 %v1120, %v1123
  %v1198 = vrot.slane %v1197, 4
  %v1199 = vmax.f32 %v1197, %v1198
  %v1200 = vrot.slane %v1199, 2
  %v1201 = vmax.f32 %v1199, %v1200
  %v1202 = vrot.slane %v1201, 1
  %v1203 = vmax.f32 %v1201, %v1202
  %v1204 = vmax.f32 %v1149, %v1152
  %v1205 = vrot.slane %v1204, 4
  %v1206 = vmax.f32 %v1204, %v1205
  %v1207 = vrot.slane %v1206, 2
  %v1208 = vmax.f32 %v1206, %v1207
  %v1209 = vrot.slane %v1208, 1
  %v1210 = vmax.f32 %v1208, %v1209
  %v1211 = vsub.f32 %v1114, %v1189
  %v1212 = vsub.f32 %v1143, %v1196
  %v1213 = vsub.f32 %v1117, %v1189
  %v1214 = vsub.f32 %v1146, %v1196
  %v1215 = vsub.f32 %v1120, %v1203
  %v1216 = vsub.f32 %v1149, %v1210
  %v1217 = vsub.f32 %v1123, %v1203
  %v1218 = vsub.f32 %v1152, %v1210
  %v1219 = vmul.f32 %v1211, 1.442695
  %v1220 = vpow.pop %v1219
  %v1221 = vmul.f32 %v1212, 1.442695
  %v1222 = vpow.pop %v1221
  %v1223 = vmul.f32 %v1213, 1.442695
  %v1224 = vpow.pop %v1223
  %v1225 = vmul.f32 %v1214, 1.442695
  %v1226 = vpow.pop %v1225
  %v1227 = vmul.f32 %v1215, 1.442695
  %v1228 = vpow.pop %v1227
  %v1229 = vmul.f32 %v1216, 1.442695
  %v1230 = vpow.pop %v1229
  %v1231 = vmul.f32 %v1217, 1.442695
  %v1232 = vpow.pop %v1231
  %v1233 = vmul.f32 %v1218, 1.442695
  %v1234 = vpow.pop %v1233
  %v1235 = vadd.f32 %v1220, %v1224
  %v1236 = vrot.slane %v1235, 4
  %v1237 = vadd.f32 %v1235, %v1236
  %v1238 = vrot.slane %v1237, 2
  %v1239 = vadd.f32 %v1237, %v1238
  %v1240 = vrot.slane %v1239, 1
  %v1241 = vadd.f32 %v1239, %v1240
  %v1242 = vadd.f32 %v1222, %v1226
  %v1243 = vrot.slane %v1242, 4
  %v1244 = vadd.f32 %v1242, %v1243
  %v1245 = vrot.slane %v1244, 2
  %v1246 = vadd.f32 %v1244, %v1245
  %v1247 = vrot.slane %v1246, 1
  %v1248 = vadd.f32 %v1246, %v1247
  %v1249 = vadd.f32 %v1228, %v1232
  %v1250 = vrot.slane %v1249, 4
  %v1251 = vadd.f32 %v1249, %v1250
  %v1252 = vrot.slane %v1251, 2
  %v1253 = vadd.f32 %v1251, %v1252
  %v1254 = vrot.slane %v1253, 1
  %v1255 = vadd.f32 %v1253, %v1254
  %v1256 = vadd.f32 %v1230, %v1234
  %v1257 = vrot.slane %v1256, 4
  %v1258 = vadd.f32 %v1256, %v1257
  %v1259 = vrot.slane %v1258, 2
  %v1260 = vadd.f32 %v1258, %v1259
  %v1261 = vrot.slane %v1260, 1
  %v1262 = vadd.f32 %v1260, %v1261
  %v1263 = vrcp.pop %v1241
  %v1264 = vmul.f32 %v1241, %v1263
  %v1265 = vsub.f32 1.0, %v1264
  %v1266 = vmul.f32 %v1263, %v1265
  %v1267 = vadd.f32 %v1263, %v1266
  %vm1268 = vweird.f32 %v1241
  %vm1269 = vweird.f32 %v1263
  %vm1270 = vmor %vm1268, %vm1269
  %v1271 = vsel %vm1270, %v1263, %v1267
  %v1272 = vand.u32 2147483647, %v1241
  %vm1273 = vcmp.eq.f32.partialorder %v1272, 8.507059e+37
  %v1274 = vand.u32 %v1241, 2147483648
  %v1275 = vor.u32 1.1754944e-38, %v1274
  %v1276 = vsel %vm1273, %v1275, %v1271
  %v1277 = vmul.f32 %v1220, %v1276
  %v1278 = vrcp.pop %v1248
  %v1279 = vmul.f32 %v1248, %v1278
  %v1280 = vsub.f32 1.0, %v1279
  %v1281 = vmul.f32 %v1278, %v1280
  %v1282 = vadd.f32 %v1278, %v1281
  %vm1283 = vweird.f32 %v1248
  %vm1284 = vweird.f32 %v1278
  %vm1285 = vmor %vm1283, %vm1284
  %v1286 = vsel %vm1285, %v1278, %v1282
  %v1287 = vand.u32 2147483647, %v1248
  %vm1288 = vcmp.eq.f32.partialorder %v1287, 8.507059e+37
  %v1289 = vand.u32 %v1248, 2147483648
  %v1290 = vor.u32 1.1754944e-38, %v1289
  %v1291 = vsel %vm1288, %v1290, %v1286
  %v1292 = vmul.f32 %v1222, %v1291
  %v1293 = vmul.f32 %v1224, %v1276
  %v1294 = vmul.f32 %v1226, %v1291
  %v1295 = vrcp.pop %v1255
  %v1296 = vmul.f32 %v1255, %v1295
  %v1297 = vsub.f32 1.0, %v1296
  %v1298 = vmul.f32 %v1295, %v1297
  %v1299 = vadd.f32 %v1295, %v1298
  %vm1300 = vweird.f32 %v1255
  %vm1301 = vweird.f32 %v1295
  %vm1302 = vmor %vm1300, %vm1301
  %v1303 = vsel %vm1302, %v1295, %v1299
  %v1304 = vand.u32 2147483647, %v1255
  %vm1305 = vcmp.eq.f32.partialorder %v1304, 8.507059e+37
  %v1306 = vand.u32 %v1255, 2147483648
  %v1307 = vor.u32 1.1754944e-38, %v1306
  %v1308 = vsel %vm1305, %v1307, %v1303
  %v1309 = vmul.f32 %v1228, %v1308
  %v1310 = vrcp.pop %v1262
  %v1311 = vmul.f32 %v1262, %v1310
  %v1312 = vsub.f32 1.0, %v1311
  %v1313 = vmul.f32 %v1310, %v1312
  %v1314 = vadd.f32 %v1310, %v1313
  %vm1315 = vweird.f32 %v1262
  %vm1316 = vweird.f32 %v1310
  %vm1317 = vmor %vm1315, %vm1316
  %v1318 = vsel %vm1317, %v1310, %v1314
  %v1319 = vand.u32 2147483647, %v1262
  %vm1320 = vcmp.eq.f32.partialorder %v1319, 8.507059e+37
  %v1321 = vand.u32 %v1262, 2147483648
  %v1322 = vor.u32 1.1754944e-38, %v1321
  %v1323 = vsel %vm1320, %v1322, %v1318
  %v1324 = vmul.f32 %v1230, %v1323
  %v1325 = vmul.f32 %v1232, %v1308
  %v1326 = vmul.f32 %v1234, %v1323
  %v1327 = vmul.f32 %v1277, %v1172
  %v1328 = vmul.f32 %v1293, %v1175
  %v1329 = vmul.f32 %v1309, %v1178
  %v1330 = vmul.f32 %v1325, %v1181
  %v1331 = vadd.f32 %v1327, %v1328
  %v1332 = vrot.slane %v1331, 4
  %v1333 = vadd.f32 %v1331, %v1332
  %v1334 = vrot.slane %v1333, 2
  %v1335 = vadd.f32 %v1333, %v1334
  %v1336 = vrot.slane %v1335, 1
  %v1337 = vadd.f32 %v1335, %v1336
  %v1338 = vadd.f32 %v1329, %v1330
  %v1339 = vrot.slane %v1338, 4
  %v1340 = vadd.f32 %v1338, %v1339
  %v1341 = vrot.slane %v1340, 2
  %v1342 = vadd.f32 %v1340, %v1341
  %v1343 = vrot.slane %v1342, 1
  %v1344 = vadd.f32 %v1342, %v1343
  %v1345 = vmul.f32 %v1056, %v1337
  %v1346 = vmul.f32 %v1059, %v1337
  %v1347 = vmul.f32 %v1062, %v1344
  %v1348 = vmul.f32 %v1065, %v1344
  %v1349 = vmul.f32 %v1292, %v1345
  %v1350 = vmul.f32 %v1294, %v1346
  %v1351 = vmul.f32 %v1324, %v1347
  %v1352 = vmul.f32 %v1326, %v1348
  %v1353 = vadd.f32 %v1349, %v1350
  %v1354 = vrot.slane %v1353, 4
  %v1355 = vadd.f32 %v1353, %v1354
  %v1356 = vrot.slane %v1355, 2
  %v1357 = vadd.f32 %v1355, %v1356
  %v1358 = vrot.slane %v1357, 1
  %v1359 = vadd.f32 %v1357, %v1358
  %v1360 = vadd.f32 %v1351, %v1352
  %v1361 = vrot.slane %v1360, 4
  %v1362 = vadd.f32 %v1360, %v1361
  %v1363 = vrot.slane %v1362, 2
  %v1364 = vadd.f32 %v1362, %v1363
  %v1365 = vrot.slane %v1364, 1
  %v1366 = vadd.f32 %v1364, %v1365
  %v1367 = vmul.f32 %v1085, %v1359
  %v1368 = vmul.f32 %v1088, %v1359
  %v1369 = vmul.f32 %v1091, %v1366
  %v1370 = vmul.f32 %v1094, %v1366
  %s1371 = scalar_lea.vmem %s4, 272
  %v1372 = vld [vmem:[%s1371] sm:$0xff]
  %v1373 = vld [vmem:[%s1371 + $0x8] sm:$0xff]
  %v1374 = vld [vmem:[%s1371 + $0x10] sm:$0xff]
  %v1375 = vld [vmem:[%s1371 + $0x18] sm:$0xff]
  %v1376 = vld [vmem:[%s1371 + $0x20] sm:$0xff]
  %v1377 = vld [vmem:[%s1371 + $0x28] sm:$0xff]
  %v1378 = vld [vmem:[%s1371 + $0x30] sm:$0xff]
  %v1379 = vld [vmem:[%s1371 + $0x38] sm:$0xff]
  %v1380 = vld [vmem:[%s1371 + $0x40] sm:$0xff]
  %v1381 = vld [vmem:[%s1371 + $0x48] sm:$0xff]
  %v1382 = vld [vmem:[%s1371 + $0x50] sm:$0xff]
  %v1383 = vld [vmem:[%s1371 + $0x58] sm:$0xff]
  %v1384 = vld [vmem:[%s1371 + $0x60] sm:$0xff]
  %v1385 = vld [vmem:[%s1371 + $0x68] sm:$0xff]
  %v1386 = vld [vmem:[%s1371 + $0x70] sm:$0xff]
  %v1387 = vld [vmem:[%s1371 + $0x78] sm:$0xff]
  %v1388 = vld [vmem:[%s1371 + $0x80] sm:$0x1]
  %v1389 = vperm.slane %v1388, 0
  %1390 = vmatpush.msra.mxu0 %v1387
  %1391 = vmatpush.msra.mxu0 %v1386
  %1392 = vmatpush.msra.mxu0 %v1385
  %1393 = vmatpush.msra.mxu0 %v1384
  %1394 = vmatpush.msra.mxu0 %v1383
  %1395 = vmatpush.msra.mxu0 %v1382
  %1396 = vmatpush.msra.mxu0 %v1381
  %1397 = vmatpush.msra.mxu0 %v1380
  %1398 = vmatpush.msra.mxu0 %v1379
  %1399 = vmatpush.msra.mxu0 %v1378
  %1400 = vmatpush.msra.mxu0 %v1377
  %1401 = vmatpush.msra.mxu0 %v1376
  %1402 = vmatpush.msra.mxu0 %v1375
  %1403 = vmatpush.msra.mxu0 %v1374
  %1404 = vmatpush.msra.mxu0 %v1373
  %1405 = vmatpush.msra.mxu0 %v1372
  %1406 = vmatmul.f32.gmra.mxu0 %v1367
  %v1407 = vpop.f32.mrf.mxu0
  %v1408 = vadd.f32 %v1389, %v1407
  %1409 = vmatmul.f32.gmra.mxu0 %v1368
  %v1410 = vpop.f32.mrf.mxu0
  %v1411 = vadd.f32 %v1389, %v1410
  %1412 = vmatmul.f32.gmra.mxu0 %v1369
  %v1413 = vpop.f32.mrf.mxu0
  %v1414 = vadd.f32 %v1389, %v1413
  %1415 = vmatmul.f32.gmra.mxu0 %v1370
  %v1416 = vpop.f32.mrf.mxu0
  %v1417 = vadd.f32 %v1389, %v1416
  %1418 = vdwg.mxu0
  %s1419 = scalar_lea.vmem %s1, 352
  %v1420 = vld [vmem:[%s1419] sm:$0xff]
  %v1421 = vld [vmem:[%s1419 + $0x8] sm:$0xff]
  %v1422 = vld [vmem:[%s1419 + $0x10] sm:$0xff]
  %v1423 = vld [vmem:[%s1419 + $0x18] sm:$0xff]
  %v1424 = vmul.f32 %v1408, %v1420
  %v1425 = vmul.f32 %v1411, %v1421
  %v1426 = vmul.f32 %v1414, %v1422
  %v1427 = vmul.f32 %v1417, %v1423
  %v1428 = vadd.f32 %v880, %v1424
  %v1429 = vadd.f32 %v881, %v1425
  %v1430 = vadd.f32 %v882, %v1426
  %v1431 = vadd.f32 %v883, %v1427
  %s1432 = scalar_lea.vmem %s1, 288
  %v1433 = vld [vmem:[%s1432] sm:$0xff]
  %v1434 = vld [vmem:[%s1432 + $0x8] sm:$0xff]
  %v1435 = vld [vmem:[%s1432 + $0x10] sm:$0xff]
  %v1436 = vld [vmem:[%s1432 + $0x18] sm:$0xff]
  %s1437 = scalar_lea.vmem %s1, 320
  %v1438 = vld [vmem:[%s1437] sm:$0xff]
  %v1439 = vld [vmem:[%s1437 + $0x8] sm:$0xff]
  %v1440 = vld [vmem:[%s1437 + $0x10] sm:$0xff]
  %v1441 = vld [vmem:[%s1437 + $0x18] sm:$0xff]
  %v1442 = vsel %vm91, %v1428, 0.0
  %1443 = vadd.xlane.f32.xlu0 %v1442
  %v1444 = vpop.xlane.xlu0 %1443
  %v1445 = vsel %vm91, %v1429, 0.0
  %1446 = vadd.xlane.f32.xlu0 %v1445
  %v1447 = vpop.xlane.xlu0 %1446
  %v1448 = vsel %vm91, %v1430, 0.0
  %1449 = vadd.xlane.f32.xlu0 %v1448
  %v1450 = vpop.xlane.xlu0 %1449
  %v1451 = vsel %vm91, %v1431, 0.0
  %1452 = vadd.xlane.f32.xlu0 %v1451
  %v1453 = vpop.xlane.xlu0 %1452
  %v1454 = vmul.f32 %v1444, %v110
  %v1455 = vmul.f32 %v1447, %v110
  %v1456 = vmul.f32 %v1450, %v110
  %v1457 = vmul.f32 %v1453, %v110
  %v1458 = vsub.f32 %v1428, %v1454
  %v1459 = vsub.f32 %v1429, %v1455
  %v1460 = vsub.f32 %v1430, %v1456
  %v1461 = vsub.f32 %v1431, %v1457
  %v1462 = vmul.f32 %v1458, %v1458
  %v1463 = vmul.f32 %v1459, %v1459
  %v1464 = vmul.f32 %v1460, %v1460
  %v1465 = vmul.f32 %v1461, %v1461
  %v1466 = vsel %vm91, %v1462, 0.0
  %1467 = vadd.xlane.f32.xlu0 %v1466
  %v1468 = vpop.xlane.xlu0 %1467
  %v1469 = vsel %vm91, %v1463, 0.0
  %1470 = vadd.xlane.f32.xlu0 %v1469
  %v1471 = vpop.xlane.xlu0 %1470
  %v1472 = vsel %vm91, %v1464, 0.0
  %1473 = vadd.xlane.f32.xlu0 %v1472
  %v1474 = vpop.xlane.xlu0 %1473
  %v1475 = vsel %vm91, %v1465, 0.0
  %1476 = vadd.xlane.f32.xlu0 %v1475
  %v1477 = vpop.xlane.xlu0 %1476
  %v1478 = vmul.f32 %v1468, %v110
  %v1479 = vmul.f32 %v1471, %v110
  %v1480 = vmul.f32 %v1474, %v110
  %v1481 = vmul.f32 %v1477, %v110
  %v1482 = vadd.f32 %v1478, 1e-06
  %v1483 = vadd.f32 %v1479, 1e-06
  %v1484 = vadd.f32 %v1480, 1e-06
  %v1485 = vadd.f32 %v1481, 1e-06
  %v1486 = vrsqrt.pop %v1482
  %v1487 = vmul.f32 %v1486, %v1482
  %v1488 = vmul.f32 %v1487, %v1486
  %v1489 = vmul.f32 0.5, %v1488
  %v1490 = vsub.f32 1.5, %v1489
  %v1491 = vmul.f32 %v1486, %v1490
  %vm1492 = vweird.f32 %v1482
  %vm1493 = vweird.f32 %v1486
  %vm1494 = vmor %vm1492, %vm1493
  %v1495 = vsel %vm1494, %v1486, %v1491
  %v1496 = vrsqrt.pop %v1483
  %v1497 = vmul.f32 %v1496, %v1483
  %v1498 = vmul.f32 %v1497, %v1496
  %v1499 = vmul.f32 0.5, %v1498
  %v1500 = vsub.f32 1.5, %v1499
  %v1501 = vmul.f32 %v1496, %v1500
  %vm1502 = vweird.f32 %v1483
  %vm1503 = vweird.f32 %v1496
  %vm1504 = vmor %vm1502, %vm1503
  %v1505 = vsel %vm1504, %v1496, %v1501
  %v1506 = vrsqrt.pop %v1484
  %v1507 = vmul.f32 %v1506, %v1484
  %v1508 = vmul.f32 %v1507, %v1506
  %v1509 = vmul.f32 0.5, %v1508
  %v1510 = vsub.f32 1.5, %v1509
  %v1511 = vmul.f32 %v1506, %v1510
  %vm1512 = vweird.f32 %v1484
  %vm1513 = vweird.f32 %v1506
  %vm1514 = vmor %vm1512, %vm1513
  %v1515 = vsel %vm1514, %v1506, %v1511
  %v1516 = vrsqrt.pop %v1485
  %v1517 = vmul.f32 %v1516, %v1485
  %v1518 = vmul.f32 %v1517, %v1516
  %v1519 = vmul.f32 0.5, %v1518
  %v1520 = vsub.f32 1.5, %v1519
  %v1521 = vmul.f32 %v1516, %v1520
  %vm1522 = vweird.f32 %v1485
  %vm1523 = vweird.f32 %v1516
  %vm1524 = vmor %vm1522, %vm1523
  %v1525 = vsel %vm1524, %v1516, %v1521
  %v1526 = vmul.f32 %v1495, %v1433
  %v1527 = vmul.f32 %v1505, %v1434
  %v1528 = vmul.f32 %v1515, %v1435
  %v1529 = vmul.f32 %v1525, %v1436
  %v1530 = vmul.f32 %v1458, %v1526
  %v1531 = vmul.f32 %v1459, %v1527
  %v1532 = vmul.f32 %v1460, %v1528
  %v1533 = vmul.f32 %v1461, %v1529
  %v1534 = vadd.f32 %v1530, %v1438
  %v1535 = vadd.f32 %v1531, %v1439
  %v1536 = vadd.f32 %v1532, %v1440
  %v1537 = vadd.f32 %v1533, %v1441
  %v1538 = vld [vmem:[%s990 + $0x28] sm:$0xff]
  %v1539 = vld [vmem:[%s990 + $0x58] sm:$0xff]
  %v1540 = vld [vmem:[%s990 + $0x88] sm:$0xff]
  %v1541 = vld [vmem:[%s990 + $0xb8] sm:$0xff]
  %v1542 = vld [vmem:[%s990 + $0xe8] ss:$0 sm:$0xff]
  %v1544 = vsel %vm91, %v1534, 0
  %v1547 = vsel %vm91, %v1535, 0
  %v1550 = vsel %vm91, %v1536, 0
  %v1553 = vsel %vm91, %v1537, 0
  %1555 = vmatpush.msra.mxu0 0.0
  %1556 = vmatpush.msra.mxu0 0.0
  %1557 = vmatpush.msra.mxu0 0.0
  %1558 = vmatpush.msra.mxu0 0.0
  %1559 = vmatpush.msra.mxu0 0.0
  %1560 = vmatpush.msra.mxu0 0.0
  %1561 = vmatpush.msra.mxu0 0.0
  %1562 = vmatpush.msra.mxu0 0.0
  %1563 = vmatpush.msra.mxu0 0.0
  %1564 = vmatpush.msra.mxu0 0.0
  %1565 = vmatpush.msra.mxu0 0.0
  %1566 = vmatpush.msra.mxu0 0.0
  %1567 = vmatpush.msra.mxu0 %v1541
  %1568 = vmatpush.msra.mxu0 %v1540
  %1569 = vmatpush.msra.mxu0 %v1539
  %1570 = vmatpush.msra.mxu0 %v1538
  %1571 = vmatmul.f32.gmra.mxu0 %v1544
  %v1572 = vpop.f32.mrf.mxu0
  %v1573 = vadd.f32 %v1542, %v1572
  %1574 = vmatmul.f32.gmra.mxu0 %v1547
  %v1575 = vpop.f32.mrf.mxu0
  %v1576 = vadd.f32 %v1542, %v1575
  %1577 = vmatmul.f32.gmra.mxu0 %v1550
  %v1578 = vpop.f32.mrf.mxu0
  %v1579 = vadd.f32 %v1542, %v1578
  %1580 = vmatmul.f32.gmra.mxu0 %v1553
  %v1581 = vpop.f32.mrf.mxu0
  %v1582 = vadd.f32 %v1542, %v1581
  %1583 = vdwg.mxu0
  %v1584 = vmul.f32 %v1573, 0.5
  %v1585 = vmul.f32 %v1576, 0.5
  %v1586 = vmul.f32 %v1579, 0.5
  %v1587 = vmul.f32 %v1582, 0.5
  %v1588 = vmul.f32 %v1573, 0.044715
  %v1589 = vmul.f32 %v1576, 0.044715
  %v1590 = vmul.f32 %v1579, 0.044715
  %v1591 = vmul.f32 %v1582, 0.044715
  %v1592 = vmul.f32 %v1588, %v1573
  %v1593 = vmul.f32 %v1589, %v1576
  %v1594 = vmul.f32 %v1590, %v1579
  %v1595 = vmul.f32 %v1591, %v1582
  %v1596 = vmul.f32 %v1592, %v1573
  %v1597 = vmul.f32 %v1593, %v1576
  %v1598 = vmul.f32 %v1594, %v1579
  %v1599 = vmul.f32 %v1595, %v1582
  %v1600 = vadd.f32 %v1573, %v1596
  %v1601 = vadd.f32 %v1576, %v1597
  %v1602 = vadd.f32 %v1579, %v1598
  %v1603 = vadd.f32 %v1582, %v1599
  %v1604 = vmul.f32 %v1600, 0.7978846
  %v1605 = vmul.f32 %v1601, 0.7978846
  %v1606 = vmul.f32 %v1602, 0.7978846
  %v1607 = vmul.f32 %v1603, 0.7978846
  %v1608 = vtanh.pop %v1604
  %v1609 = vtanh.pop %v1605
  %v1610 = vtanh.pop %v1606
  %v1611 = vtanh.pop %v1607
  %v1612 = vadd.f32 %v1608, 1.0
  %v1613 = vadd.f32 %v1609, 1.0
  %v1614 = vadd.f32 %v1610, 1.0
  %v1615 = vadd.f32 %v1611, 1.0
  %v1616 = vmul.f32 %v1584, %v1612
  %v1617 = vmul.f32 %v1585, %v1613
  %v1618 = vmul.f32 %v1586, %v1614
  %v1619 = vmul.f32 %v1587, %v1615
  %s1620 = scalar_lea.vmem %s4, 408
  %v1621 = vld [vmem:[%s1620] sm:$0xff]
  %v1622 = vld [vmem:[%s1620 + $0x8] sm:$0xff]
  %v1623 = vld [vmem:[%s1620 + $0x10] sm:$0xff]
  %v1624 = vld [vmem:[%s1620 + $0x18] sm:$0xff]
  %v1625 = vld [vmem:[%s1620 + $0x20] sm:$0xff]
  %v1626 = vld [vmem:[%s1620 + $0x28] sm:$0xff]
  %v1627 = vld [vmem:[%s1620 + $0x30] sm:$0xff]
  %v1628 = vld [vmem:[%s1620 + $0x38] sm:$0xff]
  %v1629 = vld [vmem:[%s1620 + $0x40] sm:$0xff]
  %v1630 = vld [vmem:[%s1620 + $0x48] sm:$0xff]
  %v1631 = vld [vmem:[%s1620 + $0x50] sm:$0xff]
  %v1632 = vld [vmem:[%s1620 + $0x58] sm:$0xff]
  %v1633 = vld [vmem:[%s1620 + $0x60] sm:$0xff]
  %v1634 = vld [vmem:[%s1620 + $0x68] sm:$0xff]
  %v1635 = vld [vmem:[%s1620 + $0x70] sm:$0xff]
  %v1636 = vld [vmem:[%s1620 + $0x78] sm:$0xff]
  %v1637 = vld [vmem:[%s1620 + $0x80] sm:$0x1]
  %v1638 = vperm.slane %v1637, 0
  %1639 = vmatpush.msra.mxu0 %v1636
  %1640 = vmatpush.msra.mxu0 %v1635
  %1641 = vmatpush.msra.mxu0 %v1634
  %1642 = vmatpush.msra.mxu0 %v1633
  %1643 = vmatpush.msra.mxu0 %v1632
  %1644 = vmatpush.msra.mxu0 %v1631
  %1645 = vmatpush.msra.mxu0 %v1630
  %1646 = vmatpush.msra.mxu0 %v1629
  %1647 = vmatpush.msra.mxu0 %v1628
  %1648 = vmatpush.msra.mxu0 %v1627
  %1649 = vmatpush.msra.mxu0 %v1626
  %1650 = vmatpush.msra.mxu0 %v1625
  %1651 = vmatpush.msra.mxu0 %v1624
  %1652 = vmatpush.msra.mxu0 %v1623
  %1653 = vmatpush.msra.mxu0 %v1622
  %1654 = vmatpush.msra.mxu0 %v1621
  %1655 = vmatmul.f32.gmra.mxu0 %v1616
  %v1656 = vpop.f32.mrf.mxu0
  %v1657 = vadd.f32 %v1638, %v1656
  %1658 = vmatmul.f32.gmra.mxu0 %v1617
  %v1659 = vpop.f32.mrf.mxu0
  %v1660 = vadd.f32 %v1638, %v1659
  %1661 = vmatmul.f32.gmra.mxu0 %v1618
  %v1662 = vpop.f32.mrf.mxu0
  %v1663 = vadd.f32 %v1638, %v1662
  %1664 = vmatmul.f32.gmra.mxu0 %v1619
  %v1665 = vpop.f32.mrf.mxu0
  %v1666 = vadd.f32 %v1638, %v1665
  %1667 = vdwg.mxu0
  %s1668 = scalar_lea.vmem %s1, 384
  %v1669 = vld [vmem:[%s1668] sm:$0xff]
  %v1670 = vld [vmem:[%s1668 + $0x8] sm:$0xff]
  %v1671 = vld [vmem:[%s1668 + $0x10] sm:$0xff]
  %v1672 = vld [vmem:[%s1668 + $0x18] sm:$0xff]
  %v1673 = vmul.f32 %v1657, %v1669
  %v1674 = vmul.f32 %v1660, %v1670
  %v1675 = vmul.f32 %v1663, %v1671
  %v1676 = vmul.f32 %v1666, %v1672
  %v1677 = vadd.f32 %v1428, %v1673
  %v1678 = vadd.f32 %v1429, %v1674
  %v1679 = vadd.f32 %v1430, %v1675
  %v1680 = vadd.f32 %v1431, %v1676
  %s1681 = scalar_lea.vmem %s1, 416
  %v1682 = vld [vmem:[%s1681] sm:$0xff]
  %v1683 = vld [vmem:[%s1681 + $0x8] sm:$0xff]
  %v1684 = vld [vmem:[%s1681 + $0x10] sm:$0xff]
  %v1685 = vld [vmem:[%s1681 + $0x18] sm:$0xff]
  %s1686 = scalar_lea.vmem %s1, 448
  %v1687 = vld [vmem:[%s1686] sm:$0xff]
  %v1688 = vld [vmem:[%s1686 + $0x8] sm:$0xff]
  %v1689 = vld [vmem:[%s1686 + $0x10] sm:$0xff]
  %v1690 = vld [vmem:[%s1686 + $0x18] sm:$0xff]
  %v1691 = vsel %vm91, %v1677, 0.0
  %1692 = vadd.xlane.f32.xlu0 %v1691
  %v1693 = vpop.xlane.xlu0 %1692
  %v1694 = vsel %vm91, %v1678, 0.0
  %1695 = vadd.xlane.f32.xlu0 %v1694
  %v1696 = vpop.xlane.xlu0 %1695
  %v1697 = vsel %vm91, %v1679, 0.0
  %1698 = vadd.xlane.f32.xlu0 %v1697
  %v1699 = vpop.xlane.xlu0 %1698
  %v1700 = vsel %vm91, %v1680, 0.0
  %1701 = vadd.xlane.f32.xlu0 %v1700
  %v1702 = vpop.xlane.xlu0 %1701
  %v1703 = vmul.f32 %v1693, %v110
  %v1704 = vmul.f32 %v1696, %v110
  %v1705 = vmul.f32 %v1699, %v110
  %v1706 = vmul.f32 %v1702, %v110
  %v1707 = vsub.f32 %v1677, %v1703
  %v1708 = vsub.f32 %v1678, %v1704
  %v1709 = vsub.f32 %v1679, %v1705
  %v1710 = vsub.f32 %v1680, %v1706
  %v1711 = vmul.f32 %v1707, %v1707
  %v1712 = vmul.f32 %v1708, %v1708
  %v1713 = vmul.f32 %v1709, %v1709
  %v1714 = vmul.f32 %v1710, %v1710
  %v1715 = vsel %vm91, %v1711, 0.0
  %1716 = vadd.xlane.f32.xlu0 %v1715
  %v1717 = vpop.xlane.xlu0 %1716
  %v1718 = vsel %vm91, %v1712, 0.0
  %1719 = vadd.xlane.f32.xlu0 %v1718
  %v1720 = vpop.xlane.xlu0 %1719
  %v1721 = vsel %vm91, %v1713, 0.0
  %1722 = vadd.xlane.f32.xlu0 %v1721
  %v1723 = vpop.xlane.xlu0 %1722
  %v1724 = vsel %vm91, %v1714, 0.0
  %1725 = vadd.xlane.f32.xlu0 %v1724
  %v1726 = vpop.xlane.xlu0 %1725
  %v1727 = vmul.f32 %v1717, %v110
  %v1728 = vmul.f32 %v1720, %v110
  %v1729 = vmul.f32 %v1723, %v110
  %v1730 = vmul.f32 %v1726, %v110
  %v1731 = vadd.f32 %v1727, 1e-06
  %v1732 = vadd.f32 %v1728, 1e-06
  %v1733 = vadd.f32 %v1729, 1e-06
  %v1734 = vadd.f32 %v1730, 1e-06
  %v1735 = vrsqrt.pop %v1731
  %v1736 = vmul.f32 %v1735, %v1731
  %v1737 = vmul.f32 %v1736, %v1735
  %v1738 = vmul.f32 0.5, %v1737
  %v1739 = vsub.f32 1.5, %v1738
  %v1740 = vmul.f32 %v1735, %v1739
  %vm1741 = vweird.f32 %v1731
  %vm1742 = vweird.f32 %v1735
  %vm1743 = vmor %vm1741, %vm1742
  %v1744 = vsel %vm1743, %v1735, %v1740
  %v1745 = vrsqrt.pop %v1732
  %v1746 = vmul.f32 %v1745, %v1732
  %v1747 = vmul.f32 %v1746, %v1745
  %v1748 = vmul.f32 0.5, %v1747
  %v1749 = vsub.f32 1.5, %v1748
  %v1750 = vmul.f32 %v1745, %v1749
  %vm1751 = vweird.f32 %v1732
  %vm1752 = vweird.f32 %v1745
  %vm1753 = vmor %vm1751, %vm1752
  %v1754 = vsel %vm1753, %v1745, %v1750
  %v1755 = vrsqrt.pop %v1733
  %v1756 = vmul.f32 %v1755, %v1733
  %v1757 = vmul.f32 %v1756, %v1755
  %v1758 = vmul.f32 0.5, %v1757
  %v1759 = vsub.f32 1.5, %v1758
  %v1760 = vmul.f32 %v1755, %v1759
  %vm1761 = vweird.f32 %v1733
  %vm1762 = vweird.f32 %v1755
  %vm1763 = vmor %vm1761, %vm1762
  %v1764 = vsel %vm1763, %v1755, %v1760
  %v1765 = vrsqrt.pop %v1734
  %v1766 = vmul.f32 %v1765, %v1734
  %v1767 = vmul.f32 %v1766, %v1765
  %v1768 = vmul.f32 0.5, %v1767
  %v1769 = vsub.f32 1.5, %v1768
  %v1770 = vmul.f32 %v1765, %v1769
  %vm1771 = vweird.f32 %v1734
  %vm1772 = vweird.f32 %v1765
  %vm1773 = vmor %vm1771, %vm1772
  %v1774 = vsel %vm1773, %v1765, %v1770
  %v1775 = vmul.f32 %v1744, %v1682
  %v1776 = vmul.f32 %v1754, %v1683
  %v1777 = vmul.f32 %v1764, %v1684
  %v1778 = vmul.f32 %v1774, %v1685
  %v1779 = vmul.f32 %v1707, %v1775
  %v1780 = vmul.f32 %v1708, %v1776
  %v1781 = vmul.f32 %v1709, %v1777
  %v1782 = vmul.f32 %v1710, %v1778
  %v1783 = vadd.f32 %v1779, %v1687
  %v1784 = vadd.f32 %v1780, %v1688
  %v1785 = vadd.f32 %v1781, %v1689
  %v1786 = vadd.f32 %v1782, %v1690
  %v1787 = vld [vmem:[%s5] sm:$0xff]
  %v1788 = vld [vmem:[%s5 + $0x8] sm:$0xff]
  %v1789 = vld [vmem:[%s5 + $0x10] sm:$0xff]
  %v1790 = vld [vmem:[%s5 + $0x18] sm:$0xff]
  %v1791 = vld [vmem:[%s5 + $0x20] sm:$0x1]
  %v1792 = vperm.slane %v1791, 0
  %v1794 = vsel %vm91, %v1783, 0
  %v1797 = vsel %vm91, %v1784, 0
  %v1800 = vsel %vm91, %v1785, 0
  %v1803 = vsel %vm91, %v1786, 0
  %1805 = vmatpush.msra.mxu0 0.0
  %1806 = vmatpush.msra.mxu0 0.0
  %1807 = vmatpush.msra.mxu0 0.0
  %1808 = vmatpush.msra.mxu0 0.0
  %1809 = vmatpush.msra.mxu0 0.0
  %1810 = vmatpush.msra.mxu0 0.0
  %1811 = vmatpush.msra.mxu0 0.0
  %1812 = vmatpush.msra.mxu0 0.0
  %1813 = vmatpush.msra.mxu0 0.0
  %1814 = vmatpush.msra.mxu0 0.0
  %1815 = vmatpush.msra.mxu0 0.0
  %1816 = vmatpush.msra.mxu0 0.0
  %1817 = vmatpush.msra.mxu0 %v1790
  %1818 = vmatpush.msra.mxu0 %v1789
  %1819 = vmatpush.msra.mxu0 %v1788
  %1820 = vmatpush.msra.mxu0 %v1787
  %1821 = vmatmul.f32.gmra.mxu0 %v1794
  %v1822 = vpop.f32.mrf.mxu0
  %v1823 = vadd.f32 %v1792, %v1822
  %1824 = vmatmul.f32.gmra.mxu0 %v1797
  %v1825 = vpop.f32.mrf.mxu0
  %v1826 = vadd.f32 %v1792, %v1825
  %1827 = vmatmul.f32.gmra.mxu0 %v1800
  %v1828 = vpop.f32.mrf.mxu0
  %v1829 = vadd.f32 %v1792, %v1828
  %1830 = vmatmul.f32.gmra.mxu0 %v1803
  %v1831 = vpop.f32.mrf.mxu0
  %v1832 = vadd.f32 %v1792, %v1831
  %1833 = vdwg.mxu0
  %1834 = vst [vmem:[%s6] sm:$0xff] %v1823
  %1835 = vst [vmem:[%s6 + $0x8] sm:$0xff] %v1826
  %1836 = vst [vmem:[%s6 + $0x10] sm:$0xff] %v1829
  %1837 = vst [vmem:[%s6 + $0x18] sm:$0xff] %v1832
  // Predicated region
  $region26: #{forward.1} parent=0 // pred_check
    _
  $region27: #{forward.1} parent=0 // pred_check_branch
    %1839 = sbr.rel (0) target = $region29
  $region28: #{forward.1} parent=0 // pred_region
    _
  $region29: #{forward.1} parent=0 // pred_fallthru
    _
  // Predicated region
  $region30: #{forward.1} parent=0 // pred_check
    _
  $region31: #{forward.1} parent=0 // pred_check_branch
    %1841 = sbr.rel (0) target = $region33
  $region32: #{forward.1} parent=0 // pred_region
    _
  $region33: #{forward.1} parent=0 // pred_fallthru
    _

</llo_original>
